<compile_context>
chip_gen: v6e
topology: v6e:2x2x1
jax: 0.10.0
libtpu: 0.0.40
codegen_flags: <defaults>
</compile_context>

<pallas_src>
import jax
import jax.numpy as jnp
import numpy as np
from jax.experimental import pallas as pl
from jax.experimental.pallas import tpu as pltpu

K = 7           # kernel_size
PAD = K // 2    # padding = kernel_size // 2


def _largest_divisor_leq(n, cap):
    cap = max(1, min(n, cap))
    for d in range(cap, 0, -1):
        if n % d == 0:
            return d
    return 1


def _spatial_attention_kernel(w_ref, x_ref, o_ref,
                              sum_ref, max_ref, pad_ref, row_ref):
    """One (batch-block, channel-block) grid step.

    w_ref  : SMEM (2*K*K,) f32  flattened conv weight [avg | max], avg pre-scaled by 1/C
    x_ref  : VMEM (bb, cblk, H, W) unpadded input block
    o_ref  : VMEM (bb, H, W)       output attention-map block
    sum_ref: VMEM (bb, H, W) f32   running channel sum
    max_ref: VMEM (bb, H, W) f32   running channel max
    pad_ref: VMEM (2, bb, H, W+2*PAD) f32  lane (W) zero-padded pooled planes
    row_ref: VMEM (bb, H+2*PAD, W) f32     sublane (H) zero-padded row accumulator
    """
    c = pl.program_id(1)
    nc = pl.num_programs(1)
    bb, H, W = o_ref.shape

    x = x_ref[...].astype(jnp.float32)          # (bb, cblk, H, W)
    part_sum = jnp.sum(x, axis=1)               # (bb, H, W)
    part_max = jnp.max(x, axis=1)               # (bb, H, W)

    @pl.when(c == 0)
    def _init():
        sum_ref[...] = part_sum
        max_ref[...] = part_max

    @pl.when(c > 0)
    def _accumulate():
        sum_ref[...] = sum_ref[...] + part_sum
        max_ref[...] = jnp.maximum(max_ref[...], part_max)

    @pl.when(c == nc - 1)
    def _finalize():
        # Zero the padded scratches, then write the pooled planes into their
        # interiors: pad regions stay exactly 0 (== the conv's zero padding).
        pad_ref[...] = jnp.zeros_like(pad_ref)
        row_ref[...] = jnp.zeros_like(row_ref)
        pad_ref[0, :, :, PAD:PAD + W] = sum_ref[...]   # "avg" plane (1/C in weights)
        pad_ref[1, :, :, PAD:PAD + W] = max_ref[...]   # "max" plane

        # Hoisted lane (W-direction) shifts: 7 per plane instead of 49.
        avg_sh = [pad_ref[0, :, :, kw:kw + W] for kw in range(K)]
        max_sh = [pad_ref[1, :, :, kw:kw + W] for kw in range(K)]

        acc = jnp.zeros((bb, H, W), jnp.float32)
        for kh in range(K):
            # Combine all W-direction taps of this kernel row on the VPU.
            row = jnp.zeros((bb, H, W), jnp.float32)
            for kw in range(K):
                row = (row
                       + w_ref[0 * K * K + kh * K + kw] * avg_sh[kw]
                       + w_ref[1 * K * K + kh * K + kw] * max_sh[kw])
            # H-direction shift: one interior store + one sublane-offset read.
            row_ref[:, PAD:PAD + H, :] = row
            acc = acc + row_ref[:, kh:kh + H, :]

        o_ref[...] = jax.nn.sigmoid(acc).astype(o_ref.dtype)


def spatial_attention(x, conv_weight, *, batch_block=None, channel_block=None):
    """x: (B, C, H, W) NCHW.  conv_weight: (1, 2, K, K) OIHW.  Returns (B, 1, H, W)."""
    B, C, H, W = x.shape
    Hp, Wp = H + 2 * PAD, W + 2 * PAD

    # --- tiling ------------------------------------------------------------
    # Channel block: cap the per-step input tile at ~2 MiB (x2 double buffer)
    # so the pipeline fits v5e's 16 MiB default scoped VMEM and v7x's 64 MiB
    # physical VMEM with plenty of headroom.
    if channel_block is None:
        channel_block = _largest_divisor_leq(C, max(1, (2 << 20) // (H * W * 4)))
    cblk = channel_block
    assert C % cblk == 0

    # Batch block: only grow past 1 when per-step traffic is tiny (amortize the
    # fixed per-step overhead); otherwise keep the parallel grid long for
    # megacore sharding and pipeline depth.
    if batch_block is None:
        step_bytes = cblk * H * W * 4
        batch_block = _largest_divisor_leq(B, max(1, (256 << 10) // step_bytes))
    bb = batch_block
    assert B % bb == 0

    nb, nc = B // bb, C // cblk

    # Glue: fold 1/C into the avg-branch weights, flatten for SMEM scalar reads.
    w2 = conv_weight.reshape(2, K * K).astype(jnp.float32)
    w_flat = jnp.concatenate([w2[0] / C, w2[1]], axis=0)   # (2*K*K,)

    # Explicit VMEM budget (double-buffered I/O blocks + scratch) with slack.
    vmem_bytes = 4 * (2 * bb * cblk * H * W      # input blocks (x2 buffers)
                      + 2 * bb * H * W           # output block (x2 buffers)
                      + 2 * bb * H * W           # sum / max scratch
                      + 2 * bb * H * Wp          # lane-padded pooled planes
                      + bb * Hp * W)             # row accumulator
    vmem_limit = int(min(64 << 20, max(16 << 20, 2 * vmem_bytes)))

    out = pl.pallas_call(
        _spatial_attention_kernel,
        out_shape=jax.ShapeDtypeStruct((B, H, W), x.dtype),
        grid=(nb, nc),
        in_specs=[
            # Tiny weight vector lives in SMEM (1-D to avoid SMEM tile padding).
            pl.BlockSpec(memory_space=pltpu.MemorySpace.SMEM),
            # Unpadded input, blocked over batch and channels.
            pl.BlockSpec((bb, cblk, H, W), lambda b, c: (b, c, 0, 0)),
        ],
        # Output block revisited across the channel axis; written only at c==last.
        out_specs=pl.BlockSpec((bb, H, W), lambda b, c: (b, 0, 0)),
        scratch_shapes=[
            pltpu.VMEM((bb, H, W), jnp.float32),       # running channel sum
            pltpu.VMEM((bb, H, W), jnp.float32),       # running channel max
            pltpu.VMEM((2, bb, H, Wp), jnp.float32),   # lane-padded pooled planes
            pltpu.VMEM((bb, Hp, W), jnp.float32),      # sublane-padded row acc
        ],
        compiler_params=pltpu.CompilerParams(
            dimension_semantics=("parallel", "arbitrary"),
            vmem_limit_bytes=vmem_limit,
        ),
    )(w_flat, x)
    return out.reshape(B, 1, H, W)


def _reference(x, conv_weight):
    """Pure-JAX reference matching the PyTorch forward."""
    avg = jnp.mean(x, axis=1, keepdims=True)
    mx = jnp.max(x, axis=1, keepdims=True)
    cat = jnp.concatenate([avg, mx], axis=1)
    out = jax.lax.conv_general_dilated(
        cat, conv_weight,
        window_strides=(1, 1),
        padding=((PAD, PAD), (PAD, PAD)),
        dimension_numbers=("NCHW", "OIHW", "NCHW"),
    )
    return jax.nn.sigmoid(out)


if __name__ == "__main__":
    key = jax.random.PRNGKey(0)
    kx, kw = jax.random.split(key)

    B, C, H, W = 2, 4, 16, 16
    x = jax.random.normal(kx, (B, C, H, W), dtype=jnp.float32)
    # Deterministic synthetic Conv2d(2, 1, 7, bias=False) weight, OIHW = (1, 2, 7, 7).
    conv_weight = jax.random.normal(kw, (1, 2, K, K), dtype=jnp.float32) * 0.1

    out = spatial_attention(x, conv_weight)
    out = jax.block_until_ready(out)

    ref = _reference(x, conv_weight)
    np.testing.assert_allclose(np.asarray(out), np.asarray(ref),
                               rtol=1e-5, atol=1e-5)
    print("KERNEL_OK")
</pallas_src>

<mosaic_0001>
module attributes {stable_mosaic.version = 11 : i64} {
  func.func @_spatial_attention_kernel(%arg0: i32, %arg1: i32, %arg2: memref<98xf32, #tpu.memory_space<smem>>, %arg3: memref<2x4x16x16xf32, #tpu.memory_space<vmem>>, %arg4: memref<2x16x16xf32, #tpu.memory_space<vmem>>, %arg5: memref<2x16x16xf32, #tpu.memory_space<vmem>>, %arg6: memref<2x16x16xf32, #tpu.memory_space<vmem>>, %arg7: memref<2x2x16x22xf32, #tpu.memory_space<vmem>>, %arg8: memref<2x22x16xf32, #tpu.memory_space<vmem>>) attributes {dimension_semantics = [#tpu.dimension_semantics<parallel>, #tpu.dimension_semantics<arbitrary>], iteration_bounds = array<i64: 1, 1>, scalar_prefetch = 0 : i64, scratch_operands = 4 : i64, tpu.core_type = #tpu.core_type<tc>, window_params = [{transform_indices = @transform_0, window_bounds = array<i64: 98>}, {transform_indices = @transform_1, window_bounds = array<i64: 2, 4, 16, 16>}, {transform_indices = @transform_2, window_bounds = array<i64: 2, 16, 16>}]} {
    %c0 = arith.constant 0 : index
    %c0_0 = arith.constant 0 : index
    %c0_1 = arith.constant 0 : index
    %c0_2 = arith.constant 0 : index
    %0 = vector.load %arg3[%c0, %c0_0, %c0_1, %c0_2] : memref<2x4x16x16xf32, #tpu.memory_space<vmem>>, vector<2x4x16x16xf32>
    %cst = arith.constant dense<0.000000e+00> : vector<2x16x16xf32>
    %1 = vector.multi_reduction <add>, %0, %cst [1] : vector<2x4x16x16xf32> to vector<2x16x16xf32>
    %cst_3 = arith.constant dense<0xFF800000> : vector<2x16x16xf32>
    %2 = vector.multi_reduction <maximumf>, %0, %cst_3 [1] : vector<2x4x16x16xf32> to vector<2x16x16xf32>
    %c0_i32 = arith.constant 0 : i32
    %3 = arith.cmpi eq, %arg1, %c0_i32 : i32
    %4 = arith.extui %3 : i1 to i32
    %c0_i32_4 = arith.constant 0 : i32
    %5 = arith.cmpi ne, %4, %c0_i32_4 : i32
    scf.if %5 {
      %c0_9 = arith.constant 0 : index
      %c0_10 = arith.constant 0 : index
      %c0_11 = arith.constant 0 : index
      %12 = vector.load %arg5[%c0_9, %c0_10, %c0_11] : memref<2x16x16xf32, #tpu.memory_space<vmem>>, vector<2x16x16xf32>
      tpu.vector_store %arg5[%c0_9, %c0_10, %c0_11], %1 {strides = array<i32>} : memref<2x16x16xf32, #tpu.memory_space<vmem>>, vector<2x16x16xf32>,
      %c0_12 = arith.constant 0 : index
      %c0_13 = arith.constant 0 : index
      %c0_14 = arith.constant 0 : index
      %13 = vector.load %arg6[%c0_12, %c0_13, %c0_14] : memref<2x16x16xf32, #tpu.memory_space<vmem>>, vector<2x16x16xf32>
      tpu.vector_store %arg6[%c0_12, %c0_13, %c0_14], %2 {strides = array<i32>} : memref<2x16x16xf32, #tpu.memory_space<vmem>>, vector<2x16x16xf32>,
    } else {
    }
    %c0_i32_5 = arith.constant 0 : i32
    %6 = arith.cmpi sgt, %arg1, %c0_i32_5 : i32
    %7 = arith.extui %6 : i1 to i32
    %c0_i32_6 = arith.constant 0 : i32
    %8 = arith.cmpi ne, %7, %c0_i32_6 : i32
    scf.if %8 {
      %c0_9 = arith.constant 0 : index
      %c0_10 = arith.constant 0 : index
      %c0_11 = arith.constant 0 : index
      %12 = vector.load %arg5[%c0_9, %c0_10, %c0_11] : memref<2x16x16xf32, #tpu.memory_space<vmem>>, vector<2x16x16xf32>
      %13 = arith.addf %12, %1 : vector<2x16x16xf32>
      %c0_12 = arith.constant 0 : index
      %c0_13 = arith.constant 0 : index
      %c0_14 = arith.constant 0 : index
      %14 = vector.load %arg5[%c0_12, %c0_13, %c0_14] : memref<2x16x16xf32, #tpu.memory_space<vmem>>, vector<2x16x16xf32>
      tpu.vector_store %arg5[%c0_12, %c0_13, %c0_14], %13 {strides = array<i32>} : memref<2x16x16xf32, #tpu.memory_space<vmem>>, vector<2x16x16xf32>,
      %c0_15 = arith.constant 0 : index
      %c0_16 = arith.constant 0 : index
      %c0_17 = arith.constant 0 : index
      %15 = vector.load %arg6[%c0_15, %c0_16, %c0_17] : memref<2x16x16xf32, #tpu.memory_space<vmem>>, vector<2x16x16xf32>
      %16 = arith.maximumf %15, %2 : vector<2x16x16xf32>
      %c0_18 = arith.constant 0 : index
      %c0_19 = arith.constant 0 : index
      %c0_20 = arith.constant 0 : index
      %17 = vector.load %arg6[%c0_18, %c0_19, %c0_20] : memref<2x16x16xf32, #tpu.memory_space<vmem>>, vector<2x16x16xf32>
      tpu.vector_store %arg6[%c0_18, %c0_19, %c0_20], %16 {strides = array<i32>} : memref<2x16x16xf32, #tpu.memory_space<vmem>>, vector<2x16x16xf32>,
    } else {
    }
    %c0_i32_7 = arith.constant 0 : i32
    %9 = arith.cmpi eq, %arg1, %c0_i32_7 : i32
    %10 = arith.extui %9 : i1 to i32
    %c0_i32_8 = arith.constant 0 : i32
    %11 = arith.cmpi ne, %10, %c0_i32_8 : i32
    scf.if %11 {
      %cst_9 = arith.constant 0.000000e+00 : f32
      %12 = vector.broadcast %cst_9 : f32 to vector<2x2x16x22xf32>
      %c0_10 = arith.constant 0 : index
      %c0_11 = arith.constant 0 : index
      %c0_12 = arith.constant 0 : index
      %c0_13 = arith.constant 0 : index
      %13 = vector.load %arg7[%c0_10, %c0_11, %c0_12, %c0_13] : memref<2x2x16x22xf32, #tpu.memory_space<vmem>>, vector<2x2x16x22xf32>
      tpu.vector_store %arg7[%c0_10, %c0_11, %c0_12, %c0_13], %12 {strides = array<i32>} : memref<2x2x16x22xf32, #tpu.memory_space<vmem>>, vector<2x2x16x22xf32>,
      %cst_14 = arith.constant 0.000000e+00 : f32
      %14 = vector.broadcast %cst_14 : f32 to vector<2x22x16xf32>
      %c0_15 = arith.constant 0 : index
      %c0_16 = arith.constant 0 : index
      %c0_17 = arith.constant 0 : index
      %15 = vector.load %arg8[%c0_15, %c0_16, %c0_17] : memref<2x22x16xf32, #tpu.memory_space<vmem>>, vector<2x22x16xf32>
      tpu.vector_store %arg8[%c0_15, %c0_16, %c0_17], %14 {strides = array<i32>} : memref<2x22x16xf32, #tpu.memory_space<vmem>>, vector<2x22x16xf32>,
      %c0_18 = arith.constant 0 : index
      %c0_19 = arith.constant 0 : index
      %c0_20 = arith.constant 0 : index
      %16 = vector.load %arg5[%c0_18, %c0_19, %c0_20] : memref<2x16x16xf32, #tpu.memory_space<vmem>>, vector<2x16x16xf32>
      %c0_21 = arith.constant 0 : index
      %c0_22 = arith.constant 0 : index
      %c0_23 = arith.constant 0 : index
      %c3 = arith.constant 3 : index
      %17 = vector.load %arg7[%c0_21, %c0_22, %c0_23, %c3] : memref<2x2x16x22xf32, #tpu.memory_space<vmem>>, vector<1x2x16x16xf32>
      %18 = vector.shape_cast %17 : vector<1x2x16x16xf32> to vector<2x16x16xf32>
      %19 = vector.shape_cast %16 : vector<2x16x16xf32> to vector<1x2x16x16xf32>
      tpu.vector_store %arg7[%c0_21, %c0_22, %c0_23, %c3], %19 {strides = array<i32>} : memref<2x2x16x22xf32, #tpu.memory_space<vmem>>, vector<1x2x16x16xf32>,
      %c0_24 = arith.constant 0 : index
      %c0_25 = arith.constant 0 : index
      %c0_26 = arith.constant 0 : index
      %20 = vector.load %arg6[%c0_24, %c0_25, %c0_26] : memref<2x16x16xf32, #tpu.memory_space<vmem>>, vector<2x16x16xf32>
      %c1 = arith.constant 1 : index
      %c0_27 = arith.constant 0 : index
      %c0_28 = arith.constant 0 : index
      %c3_29 = arith.constant 3 : index
      %21 = vector.load %arg7[%c1, %c0_27, %c0_28, %c3_29] : memref<2x2x16x22xf32, #tpu.memory_space<vmem>>, vector<1x2x16x16xf32>
      %22 = vector.shape_cast %21 : vector<1x2x16x16xf32> to vector<2x16x16xf32>
      %23 = vector.shape_cast %20 : vector<2x16x16xf32> to vector<1x2x16x16xf32>
      tpu.vector_store %arg7[%c1, %c0_27, %c0_28, %c3_29], %23 {strides = array<i32>} : memref<2x2x16x22xf32, #tpu.memory_space<vmem>>, vector<1x2x16x16xf32>,
      %c0_30 = arith.constant 0 : index
      %c0_31 = arith.constant 0 : index
      %c0_32 = arith.constant 0 : index
      %c0_33 = arith.constant 0 : index
      %24 = vector.load %arg7[%c0_30, %c0_31, %c0_32, %c0_33] : memref<2x2x16x22xf32, #tpu.memory_space<vmem>>, vector<1x2x16x16xf32>
      %25 = vector.shape_cast %24 : vector<1x2x16x16xf32> to vector<2x16x16xf32>
      %c0_34 = arith.constant 0 : index
      %c0_35 = arith.constant 0 : index
      %c0_36 = arith.constant 0 : index
      %c1_37 = arith.constant 1 : index
      %26 = vector.load %arg7[%c0_34, %c0_35, %c0_36, %c1_37] : memref<2x2x16x22xf32, #tpu.memory_space<vmem>>, vector<1x2x16x16xf32>
      %27 = vector.shape_cast %26 : vector<1x2x16x16xf32> to vector<2x16x16xf32>
      %c0_38 = arith.constant 0 : index
      %c0_39 = arith.constant 0 : index
      %c0_40 = arith.constant 0 : index
      %c2 = arith.constant 2 : index
      %28 = vector.load %arg7[%c0_38, %c0_39, %c0_40, %c2] : memref<2x2x16x22xf32, #tpu.memory_space<vmem>>, vector<1x2x16x16xf32>
      %29 = vector.shape_cast %28 : vector<1x2x16x16xf32> to vector<2x16x16xf32>
      %c0_41 = arith.constant 0 : index
      %c0_42 = arith.constant 0 : index
      %c0_43 = arith.constant 0 : index
      %c3_44 = arith.constant 3 : index
      %30 = vector.load %arg7[%c0_41, %c0_42, %c0_43, %c3_44] : memref<2x2x16x22xf32, #tpu.memory_space<vmem>>, vector<1x2x16x16xf32>
      %31 = vector.shape_cast %30 : vector<1x2x16x16xf32> to vector<2x16x16xf32>
      %c0_45 = arith.constant 0 : index
      %c0_46 = arith.constant 0 : index
      %c0_47 = arith.constant 0 : index
      %c4 = arith.constant 4 : index
      %32 = vector.load %arg7[%c0_45, %c0_46, %c0_47, %c4] : memref<2x2x16x22xf32, #tpu.memory_space<vmem>>, vector<1x2x16x16xf32>
      %33 = vector.shape_cast %32 : vector<1x2x16x16xf32> to vector<2x16x16xf32>
      %c0_48 = arith.constant 0 : index
      %c0_49 = arith.constant 0 : index
      %c0_50 = arith.constant 0 : index
      %c5 = arith.constant 5 : index
      %34 = vector.load %arg7[%c0_48, %c0_49, %c0_50, %c5] : memref<2x2x16x22xf32, #tpu.memory_space<vmem>>, vector<1x2x16x16xf32>
      %35 = vector.shape_cast %34 : vector<1x2x16x16xf32> to vector<2x16x16xf32>
      %c0_51 = arith.constant 0 : index
      %c0_52 = arith.constant 0 : index
      %c0_53 = arith.constant 0 : index
      %c6 = arith.constant 6 : index
      %36 = vector.load %arg7[%c0_51, %c0_52, %c0_53, %c6] : memref<2x2x16x22xf32, #tpu.memory_space<vmem>>, vector<1x2x16x16xf32>
      %37 = vector.shape_cast %36 : vector<1x2x16x16xf32> to vector<2x16x16xf32>
      %c1_54 = arith.constant 1 : index
      %c0_55 = arith.constant 0 : index
      %c0_56 = arith.constant 0 : index
      %c0_57 = arith.constant 0 : index
      %38 = vector.load %arg7[%c1_54, %c0_55, %c0_56, %c0_57] : memref<2x2x16x22xf32, #tpu.memory_space<vmem>>, vector<1x2x16x16xf32>
      %39 = vector.shape_cast %38 : vector<1x2x16x16xf32> to vector<2x16x16xf32>
      %c1_58 = arith.constant 1 : index
      %c0_59 = arith.constant 0 : index
      %c0_60 = arith.constant 0 : index
      %c1_61 = arith.constant 1 : index
      %40 = vector.load %arg7[%c1_58, %c0_59, %c0_60, %c1_61] : memref<2x2x16x22xf32, #tpu.memory_space<vmem>>, vector<1x2x16x16xf32>
      %41 = vector.shape_cast %40 : vector<1x2x16x16xf32> to vector<2x16x16xf32>
      %c1_62 = arith.constant 1 : index
      %c0_63 = arith.constant 0 : index
      %c0_64 = arith.constant 0 : index
      %c2_65 = arith.constant 2 : index
      %42 = vector.load %arg7[%c1_62, %c0_63, %c0_64, %c2_65] : memref<2x2x16x22xf32, #tpu.memory_space<vmem>>, vector<1x2x16x16xf32>
      %43 = vector.shape_cast %42 : vector<1x2x16x16xf32> to vector<2x16x16xf32>
      %c1_66 = arith.constant 1 : index
      %c0_67 = arith.constant 0 : index
      %c0_68 = arith.constant 0 : index
      %c3_69 = arith.constant 3 : index
      %44 = vector.load %arg7[%c1_66, %c0_67, %c0_68, %c3_69] : memref<2x2x16x22xf32, #tpu.memory_space<vmem>>, vector<1x2x16x16xf32>
      %45 = vector.shape_cast %44 : vector<1x2x16x16xf32> to vector<2x16x16xf32>
      %c1_70 = arith.constant 1 : index
      %c0_71 = arith.constant 0 : index
      %c0_72 = arith.constant 0 : index
      %c4_73 = arith.constant 4 : index
      %46 = vector.load %arg7[%c1_70, %c0_71, %c0_72, %c4_73] : memref<2x2x16x22xf32, #tpu.memory_space<vmem>>, vector<1x2x16x16xf32>
      %47 = vector.shape_cast %46 : vector<1x2x16x16xf32> to vector<2x16x16xf32>
      %c1_74 = arith.constant 1 : index
      %c0_75 = arith.constant 0 : index
      %c0_76 = arith.constant 0 : index
      %c5_77 = arith.constant 5 : index
      %48 = vector.load %arg7[%c1_74, %c0_75, %c0_76, %c5_77] : memref<2x2x16x22xf32, #tpu.memory_space<vmem>>, vector<1x2x16x16xf32>
      %49 = vector.shape_cast %48 : vector<1x2x16x16xf32> to vector<2x16x16xf32>
      %c1_78 = arith.constant 1 : index
      %c0_79 = arith.constant 0 : index
      %c0_80 = arith.constant 0 : index
      %c6_81 = arith.constant 6 : index
      %50 = vector.load %arg7[%c1_78, %c0_79, %c0_80, %c6_81] : memref<2x2x16x22xf32, #tpu.memory_space<vmem>>, vector<1x2x16x16xf32>
      %51 = vector.shape_cast %50 : vector<1x2x16x16xf32> to vector<2x16x16xf32>
      %cst_82 = arith.constant 0.000000e+00 : f32
      %52 = vector.broadcast %cst_82 : f32 to vector<2x16x16xf32>
      %cst_83 = arith.constant 0.000000e+00 : f32
      %53 = vector.broadcast %cst_83 : f32 to vector<2x16x16xf32>
      %c0_84 = arith.constant 0 : index
      %54 = memref.load %arg2[%c0_84] : memref<98xf32, #tpu.memory_space<smem>>
      %55 = vector.broadcast %54 : f32 to vector<2x16x16xf32>
      %56 = arith.mulf %55, %25 : vector<2x16x16xf32>
      %57 = arith.addf %53, %56 : vector<2x16x16xf32>
      %c49 = arith.constant 49 : index
      %58 = memref.load %arg2[%c49] : memref<98xf32, #tpu.memory_space<smem>>
      %59 = vector.broadcast %58 : f32 to vector<2x16x16xf32>
      %60 = arith.mulf %59, %39 : vector<2x16x16xf32>
      %61 = arith.addf %57, %60 : vector<2x16x16xf32>
      %c1_85 = arith.constant 1 : index
      %62 = memref.load %arg2[%c1_85] : memref<98xf32, #tpu.memory_space<smem>>
      %63 = vector.broadcast %62 : f32 to vector<2x16x16xf32>
      %64 = arith.mulf %63, %27 : vector<2x16x16xf32>
      %65 = arith.addf %61, %64 : vector<2x16x16xf32>
      %c50 = arith.constant 50 : index
      %66 = memref.load %arg2[%c50] : memref<98xf32, #tpu.memory_space<smem>>
      %67 = vector.broadcast %66 : f32 to vector<2x16x16xf32>
      %68 = arith.mulf %67, %41 : vector<2x16x16xf32>
      %69 = arith.addf %65, %68 : vector<2x16x16xf32>
      %c2_86 = arith.constant 2 : index
      %70 = memref.load %arg2[%c2_86] : memref<98xf32, #tpu.memory_space<smem>>
      %71 = vector.broadcast %70 : f32 to vector<2x16x16xf32>
      %72 = arith.mulf %71, %29 : vector<2x16x16xf32>
      %73 = arith.addf %69, %72 : vector<2x16x16xf32>
      %c51 = arith.constant 51 : index
      %74 = memref.load %arg2[%c51] : memref<98xf32, #tpu.memory_space<smem>>
      %75 = vector.broadcast %74 : f32 to vector<2x16x16xf32>
      %76 = arith.mulf %75, %43 : vector<2x16x16xf32>
      %77 = arith.addf %73, %76 : vector<2x16x16xf32>
      %c3_87 = arith.constant 3 : index
      %78 = memref.load %arg2[%c3_87] : memref<98xf32, #tpu.memory_space<smem>>
      %79 = vector.broadcast %78 : f32 to vector<2x16x16xf32>
      %80 = arith.mulf %79, %31 : vector<2x16x16xf32>
      %81 = arith.addf %77, %80 : vector<2x16x16xf32>
      %c52 = arith.constant 52 : index
      %82 = memref.load %arg2[%c52] : memref<98xf32, #tpu.memory_space<smem>>
      %83 = vector.broadcast %82 : f32 to vector<2x16x16xf32>
      %84 = arith.mulf %83, %45 : vector<2x16x16xf32>
      %85 = arith.addf %81, %84 : vector<2x16x16xf32>
      %c4_88 = arith.constant 4 : index
      %86 = memref.load %arg2[%c4_88] : memref<98xf32, #tpu.memory_space<smem>>
      %87 = vector.broadcast %86 : f32 to vector<2x16x16xf32>
      %88 = arith.mulf %87, %33 : vector<2x16x16xf32>
      %89 = arith.addf %85, %88 : vector<2x16x16xf32>
      %c53 = arith.constant 53 : index
      %90 = memref.load %arg2[%c53] : memref<98xf32, #tpu.memory_space<smem>>
      %91 = vector.broadcast %90 : f32 to vector<2x16x16xf32>
      %92 = arith.mulf %91, %47 : vector<2x16x16xf32>
      %93 = arith.addf %89, %92 : vector<2x16x16xf32>
      %c5_89 = arith.constant 5 : index
      %94 = memref.load %arg2[%c5_89] : memref<98xf32, #tpu.memory_space<smem>>
      %95 = vector.broadcast %94 : f32 to vector<2x16x16xf32>
      %96 = arith.mulf %95, %35 : vector<2x16x16xf32>
      %97 = arith.addf %93, %96 : vector<2x16x16xf32>
      %c54 = arith.constant 54 : index
      %98 = memref.load %arg2[%c54] : memref<98xf32, #tpu.memory_space<smem>>
      %99 = vector.broadcast %98 : f32 to vector<2x16x16xf32>
      %100 = arith.mulf %99, %49 : vector<2x16x16xf32>
      %101 = arith.addf %97, %100 : vector<2x16x16xf32>
      %c6_90 = arith.constant 6 : index
      %102 = memref.load %arg2[%c6_90] : memref<98xf32, #tpu.memory_space<smem>>
      %103 = vector.broadcast %102 : f32 to vector<2x16x16xf32>
      %104 = arith.mulf %103, %37 : vector<2x16x16xf32>
      %105 = arith.addf %101, %104 : vector<2x16x16xf32>
      %c55 = arith.constant 55 : index
      %106 = memref.load %arg2[%c55] : memref<98xf32, #tpu.memory_space<smem>>
      %107 = vector.broadcast %106 : f32 to vector<2x16x16xf32>
      %108 = arith.mulf %107, %51 : vector<2x16x16xf32>
      %109 = arith.addf %105, %108 : vector<2x16x16xf32>
      %c0_91 = arith.constant 0 : index
      %c3_92 = arith.constant 3 : index
      %c0_93 = arith.constant 0 : index
      %110 = vector.load %arg8[%c0_91, %c3_92, %c0_93] : memref<2x22x16xf32, #tpu.memory_space<vmem>>, vector<2x16x16xf32>
      tpu.vector_store %arg8[%c0_91, %c3_92, %c0_93], %109 {strides = array<i32>} : memref<2x22x16xf32, #tpu.memory_space<vmem>>, vector<2x16x16xf32>,
      %c0_94 = arith.constant 0 : index
      %c0_95 = arith.constant 0 : index
      %c0_96 = arith.constant 0 : index
      %111 = vector.load %arg8[%c0_94, %c0_95, %c0_96] : memref<2x22x16xf32, #tpu.memory_space<vmem>>, vector<2x16x16xf32>
      %112 = arith.addf %52, %111 : vector<2x16x16xf32>
      %cst_97 = arith.constant 0.000000e+00 : f32
      %113 = vector.broadcast %cst_97 : f32 to vector<2x16x16xf32>
      %c7 = arith.constant 7 : index
      %114 = memref.load %arg2[%c7] : memref<98xf32, #tpu.memory_space<smem>>
      %115 = vector.broadcast %114 : f32 to vector<2x16x16xf32>
      %116 = arith.mulf %115, %25 : vector<2x16x16xf32>
      %117 = arith.addf %113, %116 : vector<2x16x16xf32>
      %c56 = arith.constant 56 : index
      %118 = memref.load %arg2[%c56] : memref<98xf32, #tpu.memory_space<smem>>
      %119 = vector.broadcast %118 : f32 to vector<2x16x16xf32>
      %120 = arith.mulf %119, %39 : vector<2x16x16xf32>
      %121 = arith.addf %117, %120 : vector<2x16x16xf32>
      %c8 = arith.constant 8 : index
      %122 = memref.load %arg2[%c8] : memref<98xf32, #tpu.memory_space<smem>>
      %123 = vector.broadcast %122 : f32 to vector<2x16x16xf32>
      %124 = arith.mulf %123, %27 : vector<2x16x16xf32>
      %125 = arith.addf %121, %124 : vector<2x16x16xf32>
      %c57 = arith.constant 57 : index
      %126 = memref.load %arg2[%c57] : memref<98xf32, #tpu.memory_space<smem>>
      %127 = vector.broadcast %126 : f32 to vector<2x16x16xf32>
      %128 = arith.mulf %127, %41 : vector<2x16x16xf32>
      %129 = arith.addf %125, %128 : vector<2x16x16xf32>
      %c9 = arith.constant 9 : index
      %130 = memref.load %arg2[%c9] : memref<98xf32, #tpu.memory_space<smem>>
      %131 = vector.broadcast %130 : f32 to vector<2x16x16xf32>
      %132 = arith.mulf %131, %29 : vector<2x16x16xf32>
      %133 = arith.addf %129, %132 : vector<2x16x16xf32>
      %c58 = arith.constant 58 : index
      %134 = memref.load %arg2[%c58] : memref<98xf32, #tpu.memory_space<smem>>
      %135 = vector.broadcast %134 : f32 to vector<2x16x16xf32>
      %136 = arith.mulf %135, %43 : vector<2x16x16xf32>
      %137 = arith.addf %133, %136 : vector<2x16x16xf32>
      %c10 = arith.constant 10 : index
      %138 = memref.load %arg2[%c10] : memref<98xf32, #tpu.memory_space<smem>>
      %139 = vector.broadcast %138 : f32 to vector<2x16x16xf32>
      %140 = arith.mulf %139, %31 : vector<2x16x16xf32>
      %141 = arith.addf %137, %140 : vector<2x16x16xf32>
      %c59 = arith.constant 59 : index
      %142 = memref.load %arg2[%c59] : memref<98xf32, #tpu.memory_space<smem>>
      %143 = vector.broadcast %142 : f32 to vector<2x16x16xf32>
      %144 = arith.mulf %143, %45 : vector<2x16x16xf32>
      %145 = arith.addf %141, %144 : vector<2x16x16xf32>
      %c11 = arith.constant 11 : index
      %146 = memref.load %arg2[%c11] : memref<98xf32, #tpu.memory_space<smem>>
      %147 = vector.broadcast %146 : f32 to vector<2x16x16xf32>
      %148 = arith.mulf %147, %33 : vector<2x16x16xf32>
      %149 = arith.addf %145, %148 : vector<2x16x16xf32>
      %c60 = arith.constant 60 : index
      %150 = memref.load %arg2[%c60] : memref<98xf32, #tpu.memory_space<smem>>
      %151 = vector.broadcast %150 : f32 to vector<2x16x16xf32>
      %152 = arith.mulf %151, %47 : vector<2x16x16xf32>
      %153 = arith.addf %149, %152 : vector<2x16x16xf32>
      %c12 = arith.constant 12 : index
      %154 = memref.load %arg2[%c12] : memref<98xf32, #tpu.memory_space<smem>>
      %155 = vector.broadcast %154 : f32 to vector<2x16x16xf32>
      %156 = arith.mulf %155, %35 : vector<2x16x16xf32>
      %157 = arith.addf %153, %156 : vector<2x16x16xf32>
      %c61 = arith.constant 61 : index
      %158 = memref.load %arg2[%c61] : memref<98xf32, #tpu.memory_space<smem>>
      %159 = vector.broadcast %158 : f32 to vector<2x16x16xf32>
      %160 = arith.mulf %159, %49 : vector<2x16x16xf32>
      %161 = arith.addf %157, %160 : vector<2x16x16xf32>
      %c13 = arith.constant 13 : index
      %162 = memref.load %arg2[%c13] : memref<98xf32, #tpu.memory_space<smem>>
      %163 = vector.broadcast %162 : f32 to vector<2x16x16xf32>
      %164 = arith.mulf %163, %37 : vector<2x16x16xf32>
      %165 = arith.addf %161, %164 : vector<2x16x16xf32>
      %c62 = arith.constant 62 : index
      %166 = memref.load %arg2[%c62] : memref<98xf32, #tpu.memory_space<smem>>
      %167 = vector.broadcast %166 : f32 to vector<2x16x16xf32>
      %168 = arith.mulf %167, %51 : vector<2x16x16xf32>
      %169 = arith.addf %165, %168 : vector<2x16x16xf32>
      %c0_98 = arith.constant 0 : index
      %c3_99 = arith.constant 3 : index
      %c0_100 = arith.constant 0 : index
      %170 = vector.load %arg8[%c0_98, %c3_99, %c0_100] : memref<2x22x16xf32, #tpu.memory_space<vmem>>, vector<2x16x16xf32>
      tpu.vector_store %arg8[%c0_98, %c3_99, %c0_100], %169 {strides = array<i32>} : memref<2x22x16xf32, #tpu.memory_space<vmem>>, vector<2x16x16xf32>,
      %c0_101 = arith.constant 0 : index
      %c1_102 = arith.constant 1 : index
      %c0_103 = arith.constant 0 : index
      %171 = vector.load %arg8[%c0_101, %c1_102, %c0_103] : memref<2x22x16xf32, #tpu.memory_space<vmem>>, vector<2x16x16xf32>
      %172 = arith.addf %112, %171 : vector<2x16x16xf32>
      %cst_104 = arith.constant 0.000000e+00 : f32
      %173 = vector.broadcast %cst_104 : f32 to vector<2x16x16xf32>
      %c14 = arith.constant 14 : index
      %174 = memref.load %arg2[%c14] : memref<98xf32, #tpu.memory_space<smem>>
      %175 = vector.broadcast %174 : f32 to vector<2x16x16xf32>
      %176 = arith.mulf %175, %25 : vector<2x16x16xf32>
      %177 = arith.addf %173, %176 : vector<2x16x16xf32>
      %c63 = arith.constant 63 : index
      %178 = memref.load %arg2[%c63] : memref<98xf32, #tpu.memory_space<smem>>
      %179 = vector.broadcast %178 : f32 to vector<2x16x16xf32>
      %180 = arith.mulf %179, %39 : vector<2x16x16xf32>
      %181 = arith.addf %177, %180 : vector<2x16x16xf32>
      %c15 = arith.constant 15 : index
      %182 = memref.load %arg2[%c15] : memref<98xf32, #tpu.memory_space<smem>>
      %183 = vector.broadcast %182 : f32 to vector<2x16x16xf32>
      %184 = arith.mulf %183, %27 : vector<2x16x16xf32>
      %185 = arith.addf %181, %184 : vector<2x16x16xf32>
      %c64 = arith.constant 64 : index
      %186 = memref.load %arg2[%c64] : memref<98xf32, #tpu.memory_space<smem>>
      %187 = vector.broadcast %186 : f32 to vector<2x16x16xf32>
      %188 = arith.mulf %187, %41 : vector<2x16x16xf32>
      %189 = arith.addf %185, %188 : vector<2x16x16xf32>
      %c16 = arith.constant 16 : index
      %190 = memref.load %arg2[%c16] : memref<98xf32, #tpu.memory_space<smem>>
      %191 = vector.broadcast %190 : f32 to vector<2x16x16xf32>
      %192 = arith.mulf %191, %29 : vector<2x16x16xf32>
      %193 = arith.addf %189, %192 : vector<2x16x16xf32>
      %c65 = arith.constant 65 : index
      %194 = memref.load %arg2[%c65] : memref<98xf32, #tpu.memory_space<smem>>
      %195 = vector.broadcast %194 : f32 to vector<2x16x16xf32>
      %196 = arith.mulf %195, %43 : vector<2x16x16xf32>
      %197 = arith.addf %193, %196 : vector<2x16x16xf32>
      %c17 = arith.constant 17 : index
      %198 = memref.load %arg2[%c17] : memref<98xf32, #tpu.memory_space<smem>>
      %199 = vector.broadcast %198 : f32 to vector<2x16x16xf32>
      %200 = arith.mulf %199, %31 : vector<2x16x16xf32>
      %201 = arith.addf %197, %200 : vector<2x16x16xf32>
      %c66 = arith.constant 66 : index
      %202 = memref.load %arg2[%c66] : memref<98xf32, #tpu.memory_space<smem>>
      %203 = vector.broadcast %202 : f32 to vector<2x16x16xf32>
      %204 = arith.mulf %203, %45 : vector<2x16x16xf32>
      %205 = arith.addf %201, %204 : vector<2x16x16xf32>
      %c18 = arith.constant 18 : index
      %206 = memref.load %arg2[%c18] : memref<98xf32, #tpu.memory_space<smem>>
      %207 = vector.broadcast %206 : f32 to vector<2x16x16xf32>
      %208 = arith.mulf %207, %33 : vector<2x16x16xf32>
      %209 = arith.addf %205, %208 : vector<2x16x16xf32>
      %c67 = arith.constant 67 : index
      %210 = memref.load %arg2[%c67] : memref<98xf32, #tpu.memory_space<smem>>
      %211 = vector.broadcast %210 : f32 to vector<2x16x16xf32>
      %212 = arith.mulf %211, %47 : vector<2x16x16xf32>
      %213 = arith.addf %209, %212 : vector<2x16x16xf32>
      %c19 = arith.constant 19 : index
      %214 = memref.load %arg2[%c19] : memref<98xf32, #tpu.memory_space<smem>>
      %215 = vector.broadcast %214 : f32 to vector<2x16x16xf32>
      %216 = arith.mulf %215, %35 : vector<2x16x16xf32>
      %217 = arith.addf %213, %216 : vector<2x16x16xf32>
      %c68 = arith.constant 68 : index
      %218 = memref.load %arg2[%c68] : memref<98xf32, #tpu.memory_space<smem>>
      %219 = vector.broadcast %218 : f32 to vector<2x16x16xf32>
      %220 = arith.mulf %219, %49 : vector<2x16x16xf32>
      %221 = arith.addf %217, %220 : vector<2x16x16xf32>
      %c20 = arith.constant 20 : index
      %222 = memref.load %arg2[%c20] : memref<98xf32, #tpu.memory_space<smem>>
      %223 = vector.broadcast %222 : f32 to vector<2x16x16xf32>
      %224 = arith.mulf %223, %37 : vector<2x16x16xf32>
      %225 = arith.addf %221, %224 : vector<2x16x16xf32>
      %c69 = arith.constant 69 : index
      %226 = memref.load %arg2[%c69] : memref<98xf32, #tpu.memory_space<smem>>
      %227 = vector.broadcast %226 : f32 to vector<2x16x16xf32>
      %228 = arith.mulf %227, %51 : vector<2x16x16xf32>
      %229 = arith.addf %225, %228 : vector<2x16x16xf32>
      %c0_105 = arith.constant 0 : index
      %c3_106 = arith.constant 3 : index
      %c0_107 = arith.constant 0 : index
      %230 = vector.load %arg8[%c0_105, %c3_106, %c0_107] : memref<2x22x16xf32, #tpu.memory_space<vmem>>, vector<2x16x16xf32>
      tpu.vector_store %arg8[%c0_105, %c3_106, %c0_107], %229 {strides = array<i32>} : memref<2x22x16xf32, #tpu.memory_space<vmem>>, vector<2x16x16xf32>,
      %c0_108 = arith.constant 0 : index
      %c2_109 = arith.constant 2 : index
      %c0_110 = arith.constant 0 : index
      %231 = vector.load %arg8[%c0_108, %c2_109, %c0_110] : memref<2x22x16xf32, #tpu.memory_space<vmem>>, vector<2x16x16xf32>
      %232 = arith.addf %172, %231 : vector<2x16x16xf32>
      %cst_111 = arith.constant 0.000000e+00 : f32
      %233 = vector.broadcast %cst_111 : f32 to vector<2x16x16xf32>
      %c21 = arith.constant 21 : index
      %234 = memref.load %arg2[%c21] : memref<98xf32, #tpu.memory_space<smem>>
      %235 = vector.broadcast %234 : f32 to vector<2x16x16xf32>
      %236 = arith.mulf %235, %25 : vector<2x16x16xf32>
      %237 = arith.addf %233, %236 : vector<2x16x16xf32>
      %c70 = arith.constant 70 : index
      %238 = memref.load %arg2[%c70] : memref<98xf32, #tpu.memory_space<smem>>
      %239 = vector.broadcast %238 : f32 to vector<2x16x16xf32>
      %240 = arith.mulf %239, %39 : vector<2x16x16xf32>
      %241 = arith.addf %237, %240 : vector<2x16x16xf32>
      %c22 = arith.constant 22 : index
      %242 = memref.load %arg2[%c22] : memref<98xf32, #tpu.memory_space<smem>>
      %243 = vector.broadcast %242 : f32 to vector<2x16x16xf32>
      %244 = arith.mulf %243, %27 : vector<2x16x16xf32>
      %245 = arith.addf %241, %244 : vector<2x16x16xf32>
      %c71 = arith.constant 71 : index
      %246 = memref.load %arg2[%c71] : memref<98xf32, #tpu.memory_space<smem>>
      %247 = vector.broadcast %246 : f32 to vector<2x16x16xf32>
      %248 = arith.mulf %247, %41 : vector<2x16x16xf32>
      %249 = arith.addf %245, %248 : vector<2x16x16xf32>
      %c23 = arith.constant 23 : index
      %250 = memref.load %arg2[%c23] : memref<98xf32, #tpu.memory_space<smem>>
      %251 = vector.broadcast %250 : f32 to vector<2x16x16xf32>
      %252 = arith.mulf %251, %29 : vector<2x16x16xf32>
      %253 = arith.addf %249, %252 : vector<2x16x16xf32>
      %c72 = arith.constant 72 : index
      %254 = memref.load %arg2[%c72] : memref<98xf32, #tpu.memory_space<smem>>
      %255 = vector.broadcast %254 : f32 to vector<2x16x16xf32>
      %256 = arith.mulf %255, %43 : vector<2x16x16xf32>
      %257 = arith.addf %253, %256 : vector<2x16x16xf32>
      %c24 = arith.constant 24 : index
      %258 = memref.load %arg2[%c24] : memref<98xf32, #tpu.memory_space<smem>>
      %259 = vector.broadcast %258 : f32 to vector<2x16x16xf32>
      %260 = arith.mulf %259, %31 : vector<2x16x16xf32>
      %261 = arith.addf %257, %260 : vector<2x16x16xf32>
      %c73 = arith.constant 73 : index
      %262 = memref.load %arg2[%c73] : memref<98xf32, #tpu.memory_space<smem>>
      %263 = vector.broadcast %262 : f32 to vector<2x16x16xf32>
      %264 = arith.mulf %263, %45 : vector<2x16x16xf32>
      %265 = arith.addf %261, %264 : vector<2x16x16xf32>
      %c25 = arith.constant 25 : index
      %266 = memref.load %arg2[%c25] : memref<98xf32, #tpu.memory_space<smem>>
      %267 = vector.broadcast %266 : f32 to vector<2x16x16xf32>
      %268 = arith.mulf %267, %33 : vector<2x16x16xf32>
      %269 = arith.addf %265, %268 : vector<2x16x16xf32>
      %c74 = arith.constant 74 : index
      %270 = memref.load %arg2[%c74] : memref<98xf32, #tpu.memory_space<smem>>
      %271 = vector.broadcast %270 : f32 to vector<2x16x16xf32>
      %272 = arith.mulf %271, %47 : vector<2x16x16xf32>
      %273 = arith.addf %269, %272 : vector<2x16x16xf32>
      %c26 = arith.constant 26 : index
      %274 = memref.load %arg2[%c26] : memref<98xf32, #tpu.memory_space<smem>>
      %275 = vector.broadcast %274 : f32 to vector<2x16x16xf32>
      %276 = arith.mulf %275, %35 : vector<2x16x16xf32>
      %277 = arith.addf %273, %276 : vector<2x16x16xf32>
      %c75 = arith.constant 75 : index
      %278 = memref.load %arg2[%c75] : memref<98xf32, #tpu.memory_space<smem>>
      %279 = vector.broadcast %278 : f32 to vector<2x16x16xf32>
      %280 = arith.mulf %279, %49 : vector<2x16x16xf32>
      %281 = arith.addf %277, %280 : vector<2x16x16xf32>
      %c27 = arith.constant 27 : index
      %282 = memref.load %arg2[%c27] : memref<98xf32, #tpu.memory_space<smem>>
      %283 = vector.broadcast %282 : f32 to vector<2x16x16xf32>
      %284 = arith.mulf %283, %37 : vector<2x16x16xf32>
      %285 = arith.addf %281, %284 : vector<2x16x16xf32>
      %c76 = arith.constant 76 : index
      %286 = memref.load %arg2[%c76] : memref<98xf32, #tpu.memory_space<smem>>
      %287 = vector.broadcast %286 : f32 to vector<2x16x16xf32>
      %288 = arith.mulf %287, %51 : vector<2x16x16xf32>
      %289 = arith.addf %285, %288 : vector<2x16x16xf32>
      %c0_112 = arith.constant 0 : index
      %c3_113 = arith.constant 3 : index
      %c0_114 = arith.constant 0 : index
      %290 = vector.load %arg8[%c0_112, %c3_113, %c0_114] : memref<2x22x16xf32, #tpu.memory_space<vmem>>, vector<2x16x16xf32>
      tpu.vector_store %arg8[%c0_112, %c3_113, %c0_114], %289 {strides = array<i32>} : memref<2x22x16xf32, #tpu.memory_space<vmem>>, vector<2x16x16xf32>,
      %c0_115 = arith.constant 0 : index
      %c3_116 = arith.constant 3 : index
      %c0_117 = arith.constant 0 : index
      %291 = vector.load %arg8[%c0_115, %c3_116, %c0_117] : memref<2x22x16xf32, #tpu.memory_space<vmem>>, vector<2x16x16xf32>
      %292 = arith.addf %232, %291 : vector<2x16x16xf32>
      %cst_118 = arith.constant 0.000000e+00 : f32
      %293 = vector.broadcast %cst_118 : f32 to vector<2x16x16xf32>
      %c28 = arith.constant 28 : index
      %294 = memref.load %arg2[%c28] : memref<98xf32, #tpu.memory_space<smem>>
      %295 = vector.broadcast %294 : f32 to vector<2x16x16xf32>
      %296 = arith.mulf %295, %25 : vector<2x16x16xf32>
      %297 = arith.addf %293, %296 : vector<2x16x16xf32>
      %c77 = arith.constant 77 : index
      %298 = memref.load %arg2[%c77] : memref<98xf32, #tpu.memory_space<smem>>
      %299 = vector.broadcast %298 : f32 to vector<2x16x16xf32>
      %300 = arith.mulf %299, %39 : vector<2x16x16xf32>
      %301 = arith.addf %297, %300 : vector<2x16x16xf32>
      %c29 = arith.constant 29 : index
      %302 = memref.load %arg2[%c29] : memref<98xf32, #tpu.memory_space<smem>>
      %303 = vector.broadcast %302 : f32 to vector<2x16x16xf32>
      %304 = arith.mulf %303, %27 : vector<2x16x16xf32>
      %305 = arith.addf %301, %304 : vector<2x16x16xf32>
      %c78 = arith.constant 78 : index
      %306 = memref.load %arg2[%c78] : memref<98xf32, #tpu.memory_space<smem>>
      %307 = vector.broadcast %306 : f32 to vector<2x16x16xf32>
      %308 = arith.mulf %307, %41 : vector<2x16x16xf32>
      %309 = arith.addf %305, %308 : vector<2x16x16xf32>
      %c30 = arith.constant 30 : index
      %310 = memref.load %arg2[%c30] : memref<98xf32, #tpu.memory_space<smem>>
      %311 = vector.broadcast %310 : f32 to vector<2x16x16xf32>
      %312 = arith.mulf %311, %29 : vector<2x16x16xf32>
      %313 = arith.addf %309, %312 : vector<2x16x16xf32>
      %c79 = arith.constant 79 : index
      %314 = memref.load %arg2[%c79] : memref<98xf32, #tpu.memory_space<smem>>
      %315 = vector.broadcast %314 : f32 to vector<2x16x16xf32>
      %316 = arith.mulf %315, %43 : vector<2x16x16xf32>
      %317 = arith.addf %313, %316 : vector<2x16x16xf32>
      %c31 = arith.constant 31 : index
      %318 = memref.load %arg2[%c31] : memref<98xf32, #tpu.memory_space<smem>>
      %319 = vector.broadcast %318 : f32 to vector<2x16x16xf32>
      %320 = arith.mulf %319, %31 : vector<2x16x16xf32>
      %321 = arith.addf %317, %320 : vector<2x16x16xf32>
      %c80 = arith.constant 80 : index
      %322 = memref.load %arg2[%c80] : memref<98xf32, #tpu.memory_space<smem>>
      %323 = vector.broadcast %322 : f32 to vector<2x16x16xf32>
      %324 = arith.mulf %323, %45 : vector<2x16x16xf32>
      %325 = arith.addf %321, %324 : vector<2x16x16xf32>
      %c32 = arith.constant 32 : index
      %326 = memref.load %arg2[%c32] : memref<98xf32, #tpu.memory_space<smem>>
      %327 = vector.broadcast %326 : f32 to vector<2x16x16xf32>
      %328 = arith.mulf %327, %33 : vector<2x16x16xf32>
      %329 = arith.addf %325, %328 : vector<2x16x16xf32>
      %c81 = arith.constant 81 : index
      %330 = memref.load %arg2[%c81] : memref<98xf32, #tpu.memory_space<smem>>
      %331 = vector.broadcast %330 : f32 to vector<2x16x16xf32>
      %332 = arith.mulf %331, %47 : vector<2x16x16xf32>
      %333 = arith.addf %329, %332 : vector<2x16x16xf32>
      %c33 = arith.constant 33 : index
      %334 = memref.load %arg2[%c33] : memref<98xf32, #tpu.memory_space<smem>>
      %335 = vector.broadcast %334 : f32 to vector<2x16x16xf32>
      %336 = arith.mulf %335, %35 : vector<2x16x16xf32>
      %337 = arith.addf %333, %336 : vector<2x16x16xf32>
      %c82 = arith.constant 82 : index
      %338 = memref.load %arg2[%c82] : memref<98xf32, #tpu.memory_space<smem>>
      %339 = vector.broadcast %338 : f32 to vector<2x16x16xf32>
      %340 = arith.mulf %339, %49 : vector<2x16x16xf32>
      %341 = arith.addf %337, %340 : vector<2x16x16xf32>
      %c34 = arith.constant 34 : index
      %342 = memref.load %arg2[%c34] : memref<98xf32, #tpu.memory_space<smem>>
      %343 = vector.broadcast %342 : f32 to vector<2x16x16xf32>
      %344 = arith.mulf %343, %37 : vector<2x16x16xf32>
      %345 = arith.addf %341, %344 : vector<2x16x16xf32>
      %c83 = arith.constant 83 : index
      %346 = memref.load %arg2[%c83] : memref<98xf32, #tpu.memory_space<smem>>
      %347 = vector.broadcast %346 : f32 to vector<2x16x16xf32>
      %348 = arith.mulf %347, %51 : vector<2x16x16xf32>
      %349 = arith.addf %345, %348 : vector<2x16x16xf32>
      %c0_119 = arith.constant 0 : index
      %c3_120 = arith.constant 3 : index
      %c0_121 = arith.constant 0 : index
      %350 = vector.load %arg8[%c0_119, %c3_120, %c0_121] : memref<2x22x16xf32, #tpu.memory_space<vmem>>, vector<2x16x16xf32>
      tpu.vector_store %arg8[%c0_119, %c3_120, %c0_121], %349 {strides = array<i32>} : memref<2x22x16xf32, #tpu.memory_space<vmem>>, vector<2x16x16xf32>,
      %c0_122 = arith.constant 0 : index
      %c4_123 = arith.constant 4 : index
      %c0_124 = arith.constant 0 : index
      %351 = vector.load %arg8[%c0_122, %c4_123, %c0_124] : memref<2x22x16xf32, #tpu.memory_space<vmem>>, vector<2x16x16xf32>
      %352 = arith.addf %292, %351 : vector<2x16x16xf32>
      %cst_125 = arith.constant 0.000000e+00 : f32
      %353 = vector.broadcast %cst_125 : f32 to vector<2x16x16xf32>
      %c35 = arith.constant 35 : index
      %354 = memref.load %arg2[%c35] : memref<98xf32, #tpu.memory_space<smem>>
      %355 = vector.broadcast %354 : f32 to vector<2x16x16xf32>
      %356 = arith.mulf %355, %25 : vector<2x16x16xf32>
      %357 = arith.addf %353, %356 : vector<2x16x16xf32>
      %c84 = arith.constant 84 : index
      %358 = memref.load %arg2[%c84] : memref<98xf32, #tpu.memory_space<smem>>
      %359 = vector.broadcast %358 : f32 to vector<2x16x16xf32>
      %360 = arith.mulf %359, %39 : vector<2x16x16xf32>
      %361 = arith.addf %357, %360 : vector<2x16x16xf32>
      %c36 = arith.constant 36 : index
      %362 = memref.load %arg2[%c36] : memref<98xf32, #tpu.memory_space<smem>>
      %363 = vector.broadcast %362 : f32 to vector<2x16x16xf32>
      %364 = arith.mulf %363, %27 : vector<2x16x16xf32>
      %365 = arith.addf %361, %364 : vector<2x16x16xf32>
      %c85 = arith.constant 85 : index
      %366 = memref.load %arg2[%c85] : memref<98xf32, #tpu.memory_space<smem>>
      %367 = vector.broadcast %366 : f32 to vector<2x16x16xf32>
      %368 = arith.mulf %367, %41 : vector<2x16x16xf32>
      %369 = arith.addf %365, %368 : vector<2x16x16xf32>
      %c37 = arith.constant 37 : index
      %370 = memref.load %arg2[%c37] : memref<98xf32, #tpu.memory_space<smem>>
      %371 = vector.broadcast %370 : f32 to vector<2x16x16xf32>
      %372 = arith.mulf %371, %29 : vector<2x16x16xf32>
      %373 = arith.addf %369, %372 : vector<2x16x16xf32>
      %c86 = arith.constant 86 : index
      %374 = memref.load %arg2[%c86] : memref<98xf32, #tpu.memory_space<smem>>
      %375 = vector.broadcast %374 : f32 to vector<2x16x16xf32>
      %376 = arith.mulf %375, %43 : vector<2x16x16xf32>
      %377 = arith.addf %373, %376 : vector<2x16x16xf32>
      %c38 = arith.constant 38 : index
      %378 = memref.load %arg2[%c38] : memref<98xf32, #tpu.memory_space<smem>>
      %379 = vector.broadcast %378 : f32 to vector<2x16x16xf32>
      %380 = arith.mulf %379, %31 : vector<2x16x16xf32>
      %381 = arith.addf %377, %380 : vector<2x16x16xf32>
      %c87 = arith.constant 87 : index
      %382 = memref.load %arg2[%c87] : memref<98xf32, #tpu.memory_space<smem>>
      %383 = vector.broadcast %382 : f32 to vector<2x16x16xf32>
      %384 = arith.mulf %383, %45 : vector<2x16x16xf32>
      %385 = arith.addf %381, %384 : vector<2x16x16xf32>
      %c39 = arith.constant 39 : index
      %386 = memref.load %arg2[%c39] : memref<98xf32, #tpu.memory_space<smem>>
      %387 = vector.broadcast %386 : f32 to vector<2x16x16xf32>
      %388 = arith.mulf %387, %33 : vector<2x16x16xf32>
      %389 = arith.addf %385, %388 : vector<2x16x16xf32>
      %c88 = arith.constant 88 : index
      %390 = memref.load %arg2[%c88] : memref<98xf32, #tpu.memory_space<smem>>
      %391 = vector.broadcast %390 : f32 to vector<2x16x16xf32>
      %392 = arith.mulf %391, %47 : vector<2x16x16xf32>
      %393 = arith.addf %389, %392 : vector<2x16x16xf32>
      %c40 = arith.constant 40 : index
      %394 = memref.load %arg2[%c40] : memref<98xf32, #tpu.memory_space<smem>>
      %395 = vector.broadcast %394 : f32 to vector<2x16x16xf32>
      %396 = arith.mulf %395, %35 : vector<2x16x16xf32>
      %397 = arith.addf %393, %396 : vector<2x16x16xf32>
      %c89 = arith.constant 89 : index
      %398 = memref.load %arg2[%c89] : memref<98xf32, #tpu.memory_space<smem>>
      %399 = vector.broadcast %398 : f32 to vector<2x16x16xf32>
      %400 = arith.mulf %399, %49 : vector<2x16x16xf32>
      %401 = arith.addf %397, %400 : vector<2x16x16xf32>
      %c41 = arith.constant 41 : index
      %402 = memref.load %arg2[%c41] : memref<98xf32, #tpu.memory_space<smem>>
      %403 = vector.broadcast %402 : f32 to vector<2x16x16xf32>
      %404 = arith.mulf %403, %37 : vector<2x16x16xf32>
      %405 = arith.addf %401, %404 : vector<2x16x16xf32>
      %c90 = arith.constant 90 : index
      %406 = memref.load %arg2[%c90] : memref<98xf32, #tpu.memory_space<smem>>
      %407 = vector.broadcast %406 : f32 to vector<2x16x16xf32>
      %408 = arith.mulf %407, %51 : vector<2x16x16xf32>
      %409 = arith.addf %405, %408 : vector<2x16x16xf32>
      %c0_126 = arith.constant 0 : index
      %c3_127 = arith.constant 3 : index
      %c0_128 = arith.constant 0 : index
      %410 = vector.load %arg8[%c0_126, %c3_127, %c0_128] : memref<2x22x16xf32, #tpu.memory_space<vmem>>, vector<2x16x16xf32>
      tpu.vector_store %arg8[%c0_126, %c3_127, %c0_128], %409 {strides = array<i32>} : memref<2x22x16xf32, #tpu.memory_space<vmem>>, vector<2x16x16xf32>,
      %c0_129 = arith.constant 0 : index
      %c5_130 = arith.constant 5 : index
      %c0_131 = arith.constant 0 : index
      %411 = vector.load %arg8[%c0_129, %c5_130, %c0_131] : memref<2x22x16xf32, #tpu.memory_space<vmem>>, vector<2x16x16xf32>
      %412 = arith.addf %352, %411 : vector<2x16x16xf32>
      %cst_132 = arith.constant 0.000000e+00 : f32
      %413 = vector.broadcast %cst_132 : f32 to vector<2x16x16xf32>
      %c42 = arith.constant 42 : index
      %414 = memref.load %arg2[%c42] : memref<98xf32, #tpu.memory_space<smem>>
      %415 = vector.broadcast %414 : f32 to vector<2x16x16xf32>
      %416 = arith.mulf %415, %25 : vector<2x16x16xf32>
      %417 = arith.addf %413, %416 : vector<2x16x16xf32>
      %c91 = arith.constant 91 : index
      %418 = memref.load %arg2[%c91] : memref<98xf32, #tpu.memory_space<smem>>
      %419 = vector.broadcast %418 : f32 to vector<2x16x16xf32>
      %420 = arith.mulf %419, %39 : vector<2x16x16xf32>
      %421 = arith.addf %417, %420 : vector<2x16x16xf32>
      %c43 = arith.constant 43 : index
      %422 = memref.load %arg2[%c43] : memref<98xf32, #tpu.memory_space<smem>>
      %423 = vector.broadcast %422 : f32 to vector<2x16x16xf32>
      %424 = arith.mulf %423, %27 : vector<2x16x16xf32>
      %425 = arith.addf %421, %424 : vector<2x16x16xf32>
      %c92 = arith.constant 92 : index
      %426 = memref.load %arg2[%c92] : memref<98xf32, #tpu.memory_space<smem>>
      %427 = vector.broadcast %426 : f32 to vector<2x16x16xf32>
      %428 = arith.mulf %427, %41 : vector<2x16x16xf32>
      %429 = arith.addf %425, %428 : vector<2x16x16xf32>
      %c44 = arith.constant 44 : index
      %430 = memref.load %arg2[%c44] : memref<98xf32, #tpu.memory_space<smem>>
      %431 = vector.broadcast %430 : f32 to vector<2x16x16xf32>
      %432 = arith.mulf %431, %29 : vector<2x16x16xf32>
      %433 = arith.addf %429, %432 : vector<2x16x16xf32>
      %c93 = arith.constant 93 : index
      %434 = memref.load %arg2[%c93] : memref<98xf32, #tpu.memory_space<smem>>
      %435 = vector.broadcast %434 : f32 to vector<2x16x16xf32>
      %436 = arith.mulf %435, %43 : vector<2x16x16xf32>
      %437 = arith.addf %433, %436 : vector<2x16x16xf32>
      %c45 = arith.constant 45 : index
      %438 = memref.load %arg2[%c45] : memref<98xf32, #tpu.memory_space<smem>>
      %439 = vector.broadcast %438 : f32 to vector<2x16x16xf32>
      %440 = arith.mulf %439, %31 : vector<2x16x16xf32>
      %441 = arith.addf %437, %440 : vector<2x16x16xf32>
      %c94 = arith.constant 94 : index
      %442 = memref.load %arg2[%c94] : memref<98xf32, #tpu.memory_space<smem>>
      %443 = vector.broadcast %442 : f32 to vector<2x16x16xf32>
      %444 = arith.mulf %443, %45 : vector<2x16x16xf32>
      %445 = arith.addf %441, %444 : vector<2x16x16xf32>
      %c46 = arith.constant 46 : index
      %446 = memref.load %arg2[%c46] : memref<98xf32, #tpu.memory_space<smem>>
      %447 = vector.broadcast %446 : f32 to vector<2x16x16xf32>
      %448 = arith.mulf %447, %33 : vector<2x16x16xf32>
      %449 = arith.addf %445, %448 : vector<2x16x16xf32>
      %c95 = arith.constant 95 : index
      %450 = memref.load %arg2[%c95] : memref<98xf32, #tpu.memory_space<smem>>
      %451 = vector.broadcast %450 : f32 to vector<2x16x16xf32>
      %452 = arith.mulf %451, %47 : vector<2x16x16xf32>
      %453 = arith.addf %449, %452 : vector<2x16x16xf32>
      %c47 = arith.constant 47 : index
      %454 = memref.load %arg2[%c47] : memref<98xf32, #tpu.memory_space<smem>>
      %455 = vector.broadcast %454 : f32 to vector<2x16x16xf32>
      %456 = arith.mulf %455, %35 : vector<2x16x16xf32>
      %457 = arith.addf %453, %456 : vector<2x16x16xf32>
      %c96 = arith.constant 96 : index
      %458 = memref.load %arg2[%c96] : memref<98xf32, #tpu.memory_space<smem>>
      %459 = vector.broadcast %458 : f32 to vector<2x16x16xf32>
      %460 = arith.mulf %459, %49 : vector<2x16x16xf32>
      %461 = arith.addf %457, %460 : vector<2x16x16xf32>
      %c48 = arith.constant 48 : index
      %462 = memref.load %arg2[%c48] : memref<98xf32, #tpu.memory_space<smem>>
      %463 = vector.broadcast %462 : f32 to vector<2x16x16xf32>
      %464 = arith.mulf %463, %37 : vector<2x16x16xf32>
      %465 = arith.addf %461, %464 : vector<2x16x16xf32>
      %c97 = arith.constant 97 : index
      %466 = memref.load %arg2[%c97] : memref<98xf32, #tpu.memory_space<smem>>
      %467 = vector.broadcast %466 : f32 to vector<2x16x16xf32>
      %468 = arith.mulf %467, %51 : vector<2x16x16xf32>
      %469 = arith.addf %465, %468 : vector<2x16x16xf32>
      %c0_133 = arith.constant 0 : index
      %c3_134 = arith.constant 3 : index
      %c0_135 = arith.constant 0 : index
      %470 = vector.load %arg8[%c0_133, %c3_134, %c0_135] : memref<2x22x16xf32, #tpu.memory_space<vmem>>, vector<2x16x16xf32>
      tpu.vector_store %arg8[%c0_133, %c3_134, %c0_135], %469 {strides = array<i32>} : memref<2x22x16xf32, #tpu.memory_space<vmem>>, vector<2x16x16xf32>,
      %c0_136 = arith.constant 0 : index
      %c6_137 = arith.constant 6 : index
      %c0_138 = arith.constant 0 : index
      %471 = vector.load %arg8[%c0_136, %c6_137, %c0_138] : memref<2x22x16xf32, #tpu.memory_space<vmem>>, vector<2x16x16xf32>
      %472 = arith.addf %412, %471 : vector<2x16x16xf32>
      %473 = arith.negf %472 : vector<2x16x16xf32>
      %474 = math.exp %473 : vector<2x16x16xf32>
      %cst_139 = arith.constant 1.000000e+00 : f32
      %475 = vector.broadcast %cst_139 : f32 to vector<2x16x16xf32>
      %476 = arith.addf %475, %474 : vector<2x16x16xf32>
      %477 = arith.divf %475, %476 : vector<2x16x16xf32>
      %c0_140 = arith.constant 0 : index
      %c0_141 = arith.constant 0 : index
      %c0_142 = arith.constant 0 : index
      %478 = vector.load %arg4[%c0_140, %c0_141, %c0_142] : memref<2x16x16xf32, #tpu.memory_space<vmem>>, vector<2x16x16xf32>
      tpu.vector_store %arg4[%c0_140, %c0_141, %c0_142], %477 {strides = array<i32>} : memref<2x16x16xf32, #tpu.memory_space<vmem>>, vector<2x16x16xf32>,
    } else {
    }
    return
  }
  func.func @transform_0(%arg0: i32, %arg1: i32) -> i32 {
    %c0_i32 = arith.constant 0 : i32
    %c0_i32_0 = arith.constant 0 : i32
    return %c0_i32 : i32
  }
  func.func @transform_1(%arg0: i32, %arg1: i32) -> (i32, i32, i32, i32) {
    %c0_i32 = arith.constant 0 : i32
    %c0_i32_0 = arith.constant 0 : i32
    %c0_i32_1 = arith.constant 0 : i32
    return %arg0, %arg1, %c0_i32, %c0_i32_0 : i32, i32, i32, i32
  }
  func.func @transform_2(%arg0: i32, %arg1: i32) -> (i32, i32, i32) {
    %c0_i32 = arith.constant 0 : i32
    %c0_i32_0 = arith.constant 0 : i32
    %c0_i32_1 = arith.constant 0 : i32
    return %arg0, %c0_i32, %c0_i32_0 : i32, i32, i32
  }
}

</mosaic_0001>

<llo_original>
// kernel: tpu_custom_call.1
$region0: #{tpu_custom_call.1}
  #allocation0 [shape = 'u32[]', space=smem, size = 0x4, offset = 0x4, fixed_abs, tag = 'smem constant byte address 0x4 - core index']
  #allocation1 [shape = 'u32[144,128]{1,0:T(1,128)}', space=vmem, size = 0x12000, scoped, tag = 'internal scratch']
  #allocation2 [shape = 'f32[2,16,16]{2,1,0:T(8,128)}', space=vmem, size = 0x4000, scoped, tag = 'scratch operand']
  #allocation3 [shape = 'f32[2,16,16]{2,1,0:T(8,128)}', space=vmem, size = 0x4000, scoped, tag = 'scratch operand']
  #allocation4 [shape = 'f32[2,2,16,22]{3,2,1,0:T(8,128)}', space=vmem, size = 0x8000, scoped, tag = 'scratch operand']
  #allocation5 [shape = 'f32[2,22,16]{2,1,0:T(8,128)}', space=vmem, size = 0x6000, scoped, tag = 'scratch operand']
  %s0 = inlined_call_operand.hbm [shape: f32[98], index: 0, kind: input, shape index: {}]
  %s1 = inlined_call_operand.hbm [shape: f32[2,4,16,16], index: 1, kind: input, shape index: {}]
  %s2 = inlined_call_operand.hbm [shape: f32[2,16,16], index: 2, kind: output, shape index: {}]
  %s3 = sld [smem:[#allocation0]]
  $region38: #{tpu_custom_call.1} parent=0
    _
  %s5 = ssub.s32 1, %s3
  %s6 = scalar_select 0, %s5, %s3
  $region1: #{tpu_custom_call.1} parent=0
    #allocation6 [shape = 'u8[512]{0}', space=smem, size = 0x200, scoped, tag = 'input window, operand 0, single buffered']
    #allocation7 [shape = 's32[1]{0}', space=sflag, size = 0x4, scoped, tag = 'scoped memory for tpu_custom_call.1']
    #allocation8 [shape = 's32[1]{0}', space=sflag, size = 0x4, scoped, tag = 'scoped memory for tpu_custom_call.1']
    #allocation9 [shape = 's32[1]{0}', space=sflag, size = 0x4, scoped, tag = 'scoped memory for tpu_custom_call.1']
    #allocation10 [shape = 'u8[65536]{0}', space=vmem, size = 0x10000, scoped, tag = 'input window, operand 1, single buffered']
    #allocation11 [shape = 'u8[16384]{0}', space=vmem, size = 0x4000, scoped, tag = 'output window, operand 0, single buffered']
    %7 = vsyncpa [#allocation9], 0
    %8 = vsyncpa [#allocation7], 0
    %9 = vsyncpa [#allocation8], 0
    // Predicated region
    $region2: #{tpu_custom_call.1} parent=1 // pred_check
      _
    $region3: #{tpu_custom_call.1} parent=1 // pred_check_branch
      %11 = sbr.rel (0) target = $region5
    $region4: #{tpu_custom_call.1} parent=1 // pred_region
      %s13 = ssub.s32 16, 16
      %14 = vsyncadd [#allocation9], %s13
      %17 = dma.hbm_to_smem %s0, 16, [#allocation6], [#allocation9]
    $region5: #{tpu_custom_call.1} parent=1 // pred_fallthru
      _
    // Predicated region
    $region6: #{tpu_custom_call.1} parent=1 // pred_check
      _
    $region7: #{tpu_custom_call.1} parent=1 // pred_check_branch
      %19 = sbr.rel (0) target = $region9
    $region8: #{tpu_custom_call.1} parent=1 // pred_region
      %s21 = ssub.s32 2048, 2048
      %22 = vsyncadd [#allocation7], %s21
      %s23 = sshll.u32 [#allocation10], 4
      %s24 = int_to_ptr.vmem [resolvable:$true] %s23
      %29 = dma.hbm_to_vmem [thread:$0]  %s1, 2048, %s24, [#allocation7], 128, 128, 8
    $region9: #{tpu_custom_call.1} parent=1 // pred_fallthru
      _
    // Predicated region
    $region10: #{tpu_custom_call.1} parent=1 // pred_check
      _
    $region11: #{tpu_custom_call.1} parent=1 // pred_check_branch
      %31 = sbr.rel (0) target = $region13
    $region12: #{tpu_custom_call.1} parent=1 // pred_region
      %32 = dma.done [#allocation9], 16
    $region13: #{tpu_custom_call.1} parent=1 // pred_fallthru
      _
    // Predicated region
    $region14: #{tpu_custom_call.1} parent=1 // pred_check
      _
    $region15: #{tpu_custom_call.1} parent=1 // pred_check_branch
      %34 = sbr.rel (0) target = $region17
    $region16: #{tpu_custom_call.1} parent=1 // pred_region
      %35 = dma.done [#allocation7], 2048
    $region17: #{tpu_custom_call.1} parent=1 // pred_fallthru
      _
    %36 = sfence
    %v37 = vld [vmem:[#allocation10] sm:$0xff]
    %v38 = vld [vmem:[#allocation10 + $0x8] sm:$0xff]
    %v39 = vld [vmem:[#allocation10 + $0x10] sm:$0xff]
    %v40 = vld [vmem:[#allocation10 + $0x18] sm:$0xff]
    %v41 = vld [vmem:[#allocation10 + $0x20] sm:$0xff]
    %v42 = vld [vmem:[#allocation10 + $0x28] sm:$0xff]
    %v43 = vld [vmem:[#allocation10 + $0x30] sm:$0xff]
    %v44 = vld [vmem:[#allocation10 + $0x38] sm:$0xff]
    %v45 = vld [vmem:[#allocation10 + $0x40] sm:$0xff]
    %v46 = vld [vmem:[#allocation10 + $0x48] sm:$0xff]
    %v47 = vld [vmem:[#allocation10 + $0x50] sm:$0xff]
    %v48 = vld [vmem:[#allocation10 + $0x58] sm:$0xff]
    %v49 = vld [vmem:[#allocation10 + $0x60] sm:$0xff]
    %v50 = vld [vmem:[#allocation10 + $0x68] sm:$0xff]
    %v51 = vld [vmem:[#allocation10 + $0x70] sm:$0xff]
    %v52 = vld [vmem:[#allocation10 + $0x78] sm:$0xff]
    %vm53 = vcmask 130048
    %v54 = vsel %vm53, %v37, 0.0
    %v55 = vsel %vm53, %v39, 0.0
    %v56 = vadd.f32 %v54, %v55
    %v57 = vsel %vm53, %v41, 0.0
    %v58 = vadd.f32 %v56, %v57
    %v59 = vsel %vm53, %v43, 0.0
    %v60 = vadd.f32 %v58, %v59
    %v61 = vsel %vm53, %v38, 0.0
    %v62 = vsel %vm53, %v40, 0.0
    %v63 = vadd.f32 %v61, %v62
    %v64 = vsel %vm53, %v42, 0.0
    %v65 = vadd.f32 %v63, %v64
    %v66 = vsel %vm53, %v44, 0.0
    %v67 = vadd.f32 %v65, %v66
    %v68 = vsel %vm53, %v45, 0.0
    %v69 = vsel %vm53, %v47, 0.0
    %v70 = vadd.f32 %v68, %v69
    %v71 = vsel %vm53, %v49, 0.0
    %v72 = vadd.f32 %v70, %v71
    %v73 = vsel %vm53, %v51, 0.0
    %v74 = vadd.f32 %v72, %v73
    %v75 = vsel %vm53, %v46, 0.0
    %v76 = vsel %vm53, %v48, 0.0
    %v77 = vadd.f32 %v75, %v76
    %v78 = vsel %vm53, %v50, 0.0
    %v79 = vadd.f32 %v77, %v78
    %v80 = vsel %vm53, %v52, 0.0
    %v81 = vadd.f32 %v79, %v80
    %v82 = vsel %vm53, %v37, -inf
    %v83 = vsel %vm53, %v39, -inf
    %v84 = vmax.f32 %v82, %v83
    %v85 = vsel %vm53, %v41, -inf
    %v86 = vmax.f32 %v84, %v85
    %v87 = vsel %vm53, %v43, -inf
    %v88 = vmax.f32 %v86, %v87
    %v89 = vsel %vm53, %v38, -inf
    %v90 = vsel %vm53, %v40, -inf
    %v91 = vmax.f32 %v89, %v90
    %v92 = vsel %vm53, %v42, -inf
    %v93 = vmax.f32 %v91, %v92
    %v94 = vsel %vm53, %v44, -inf
    %v95 = vmax.f32 %v93, %v94
    %v96 = vsel %vm53, %v45, -inf
    %v97 = vsel %vm53, %v47, -inf
    %v98 = vmax.f32 %v96, %v97
    %v99 = vsel %vm53, %v49, -inf
    %v100 = vmax.f32 %v98, %v99
    %v101 = vsel %vm53, %v51, -inf
    %v102 = vmax.f32 %v100, %v101
    %v103 = vsel %vm53, %v46, -inf
    %v104 = vsel %vm53, %v48, -inf
    %v105 = vmax.f32 %v103, %v104
    %v106 = vsel %vm53, %v50, -inf
    %v107 = vmax.f32 %v105, %v106
    %v108 = vsel %vm53, %v52, -inf
    %v109 = vmax.f32 %v107, %v108
    %p110 = scmp.eq.s32.totalorder 0, 0
    // Predicated region
    $region18: #{tpu_custom_call.1} parent=1 // pred_check
      %p111 = pneg %p110
    $region19: #{tpu_custom_call.1} parent=1 // pred_check_branch
      %113 = sbr.rel (%p111) target = $region21
    $region20: #{tpu_custom_call.1} parent=1 // pred_region
      %114 = vst.msk [vmem:[#allocation2] sm:$0xff] %vm53, %v60
      %115 = vst.msk [vmem:[#allocation2 + $0x8] sm:$0xff] %vm53, %v67
      %116 = vst.msk [vmem:[#allocation2 + $0x10] sm:$0xff] %vm53, %v74
      %117 = vst.msk [vmem:[#allocation2 + $0x18] sm:$0xff] %vm53, %v81
      %118 = vst.msk [vmem:[#allocation3] sm:$0xff] %vm53, %v88
      %119 = vst.msk [vmem:[#allocation3 + $0x8] sm:$0xff] %vm53, %v95
      %120 = vst.msk [vmem:[#allocation3 + $0x10] sm:$0xff] %vm53, %v102
      %121 = vst.msk [vmem:[#allocation3 + $0x18] sm:$0xff] %vm53, %v109
    $region21: #{tpu_custom_call.1} parent=1 // pred_fallthru
      _
    %p122 = scmp.gt.s32.totalorder 0, 0
    // Predicated region
    $region22: #{tpu_custom_call.1} parent=1 // pred_check
      %p123 = pneg %p122
    $region23: #{tpu_custom_call.1} parent=1 // pred_check_branch
      %125 = sbr.rel (%p123) target = $region25
    $region24: #{tpu_custom_call.1} parent=1 // pred_region
      %v126 = vld [vmem:[#allocation2] sm:$0xff]
      %v127 = vld [vmem:[#allocation2 + $0x8] sm:$0xff]
      %v128 = vld [vmem:[#allocation2 + $0x10] sm:$0xff]
      %v129 = vld [vmem:[#allocation2 + $0x18] sm:$0xff]
      %v130 = vadd.f32 %v126, %v60
      %v131 = vadd.f32 %v127, %v67
      %v132 = vadd.f32 %v128, %v74
      %v133 = vadd.f32 %v129, %v81
      %134 = vst.msk [vmem:[#allocation2] sm:$0xff] %vm53, %v130
      %135 = vst.msk [vmem:[#allocation2 + $0x8] sm:$0xff] %vm53, %v131
      %136 = vst.msk [vmem:[#allocation2 + $0x10] sm:$0xff] %vm53, %v132
      %137 = vst.msk [vmem:[#allocation2 + $0x18] sm:$0xff] %vm53, %v133
      %v138 = vld [vmem:[#allocation3] sm:$0xff]
      %v139 = vld [vmem:[#allocation3 + $0x8] sm:$0xff]
      %v140 = vld [vmem:[#allocation3 + $0x10] sm:$0xff]
      %v141 = vld [vmem:[#allocation3 + $0x18] sm:$0xff]
      %v142 = vmax.f32 %v138, %v88
      %v143 = vmax.f32 %v139, %v95
      %v144 = vmax.f32 %v140, %v102
      %v145 = vmax.f32 %v141, %v109
      %146 = vst.msk [vmem:[#allocation3] sm:$0xff] %vm53, %v142
      %147 = vst.msk [vmem:[#allocation3 + $0x8] sm:$0xff] %vm53, %v143
      %148 = vst.msk [vmem:[#allocation3 + $0x10] sm:$0xff] %vm53, %v144
      %149 = vst.msk [vmem:[#allocation3 + $0x18] sm:$0xff] %vm53, %v145
    $region25: #{tpu_custom_call.1} parent=1 // pred_fallthru
      _
    // Predicated region
    $region26: #{tpu_custom_call.1} parent=1 // pred_check
      %p150 = pneg %p110
    $region27: #{tpu_custom_call.1} parent=1 // pred_check_branch
      %152 = sbr.rel (%p150) target = $region29
    $region28: #{tpu_custom_call.1} parent=1 // pred_region
      %vm153 = vcmask 179200
      %154 = vst.msk [vmem:[#allocation4] sm:$0xff] %vm153, 0.0
      %155 = vst.msk [vmem:[#allocation4 + $0x8] sm:$0xff] %vm153, 0.0
      %156 = vst.msk [vmem:[#allocation4 + $0x10] sm:$0xff] %vm153, 0.0
      %157 = vst.msk [vmem:[#allocation4 + $0x18] sm:$0xff] %vm153, 0.0
      %158 = vst.msk [vmem:[#allocation4 + $0x20] sm:$0xff] %vm153, 0.0
      %159 = vst.msk [vmem:[#allocation4 + $0x28] sm:$0xff] %vm153, 0.0
      %160 = vst.msk [vmem:[#allocation4 + $0x30] sm:$0xff] %vm153, 0.0
      %161 = vst.msk [vmem:[#allocation4 + $0x38] sm:$0xff] %vm153, 0.0
      %162 = vst.msk [vmem:[#allocation5] sm:$0xff] %vm53, 0.0
      %163 = vst.msk [vmem:[#allocation5 + $0x8] sm:$0xff] %vm53, 0.0
      %vm164 = vcmask 128000
      %165 = vst.msk [vmem:[#allocation5 + $0x10] sm:$0x3f] %vm164, 0.0
      %166 = vst.msk [vmem:[#allocation5 + $0x18] sm:$0xff] %vm53, 0.0
      %167 = vst.msk [vmem:[#allocation5 + $0x20] sm:$0xff] %vm53, 0.0
      %168 = vst.msk [vmem:[#allocation5 + $0x28] sm:$0x3f] %vm164, 0.0
      %v169 = vld [vmem:[#allocation2] sm:$0xff]
      %v170 = vld [vmem:[#allocation2 + $0x8] sm:$0xff]
      %v171 = vld [vmem:[#allocation2 + $0x10] sm:$0xff]
      %v172 = vld [vmem:[#allocation2 + $0x18] sm:$0xff]
      %177 = vrot.lane.b32.xlu0 %v169, 3
      %v178 = vpop.permute.xlu0 %177
      %179 = vrot.lane.b32.xlu0 %v170, 3
      %v180 = vpop.permute.xlu0 %179
      %181 = vrot.lane.b32.xlu0 %v171, 3
      %v182 = vpop.permute.xlu0 %181
      %183 = vrot.lane.b32.xlu0 %v172, 3
      %v184 = vpop.permute.xlu0 %183
      %vm189 = vcmask 154648
      %190 = vst.msk [vmem:[#allocation4] sm:$0xff] %vm189, %v178
      %191 = vst.msk [vmem:[#allocation4 + $0x8] sm:$0xff] %vm189, %v180
      %192 = vst.msk [vmem:[#allocation4 + $0x10] sm:$0xff] %vm189, %v182
      %193 = vst.msk [vmem:[#allocation4 + $0x18] sm:$0xff] %vm189, %v184
      %v194 = vld [vmem:[#allocation3] sm:$0xff]
      %v195 = vld [vmem:[#allocation3 + $0x8] sm:$0xff]
      %v196 = vld [vmem:[#allocation3 + $0x10] sm:$0xff]
      %v197 = vld [vmem:[#allocation3 + $0x18] sm:$0xff]
      %202 = vrot.lane.b32.xlu0 %v194, 3
      %v203 = vpop.permute.xlu0 %202
      %204 = vrot.lane.b32.xlu0 %v195, 3
      %v205 = vpop.permute.xlu0 %204
      %206 = vrot.lane.b32.xlu0 %v196, 3
      %v207 = vpop.permute.xlu0 %206
      %208 = vrot.lane.b32.xlu0 %v197, 3
      %v209 = vpop.permute.xlu0 %208
      %s214 = scalar_lea.vmem [#allocation4], 32
      %215 = vst.msk [vmem:[%s214] sm:$0xff] %vm189, %v203
      %216 = vst.msk [vmem:[%s214 + $0x8] sm:$0xff] %vm189, %v205
      %217 = vst.msk [vmem:[%s214 + $0x10] sm:$0xff] %vm189, %v207
      %218 = vst.msk [vmem:[%s214 + $0x18] sm:$0xff] %vm189, %v209
      %v219 = vld [vmem:[#allocation4] sm:$0xff]
      %v220 = vld [vmem:[#allocation4 + $0x8] sm:$0xff]
      %v221 = vld [vmem:[#allocation4 + $0x10] sm:$0xff]
      %v222 = vld [vmem:[#allocation4 + $0x18] sm:$0xff]
      %v223 = vld [vmem:[%s214] sm:$0xff]
      %v224 = vld [vmem:[%s214 + $0x8] sm:$0xff]
      %v225 = vld [vmem:[%s214 + $0x10] sm:$0xff]
      %v226 = vld [vmem:[%s214 + $0x18] sm:$0xff]
      %s227 = sld [smem:[#allocation6]]
      %v228 = vstv %s227
      %v229 = vmul.f32 %v228, %v219
      %v230 = vmul.f32 %v228, %v220
      %v231 = vmul.f32 %v228, %v221
      %v232 = vmul.f32 %v228, %v222
      %v233 = vadd.f32 %v229, 0.0
      %v234 = vadd.f32 %v230, 0.0
      %v235 = vadd.f32 %v231, 0.0
      %v236 = vadd.f32 %v232, 0.0
      %s237 = sld [smem:[#allocation6 + $0x31]]
      %v238 = vstv %s237
      %v239 = vmul.f32 %v238, %v223
      %v240 = vmul.f32 %v238, %v224
      %v241 = vmul.f32 %v238, %v225
      %v242 = vmul.f32 %v238, %v226
      %v243 = vadd.f32 %v233, %v239
      %v244 = vadd.f32 %v234, %v240
      %v245 = vadd.f32 %v235, %v241
      %v246 = vadd.f32 %v236, %v242
      %s247 = sld [smem:[#allocation6 + $0x1]]
      %v248 = vstv %s247
      %v249 = vmul.f32 %v248, %v219
      %v250 = vmul.f32 %v248, %v220
      %v251 = vmul.f32 %v248, %v221
      %v252 = vmul.f32 %v248, %v222
      %257 = vrot.lane.b32.xlu0 %v249, 127
      %v258 = vpop.permute.xlu0 %257
      %259 = vrot.lane.b32.xlu0 %v250, 127
      %v260 = vpop.permute.xlu0 %259
      %261 = vrot.lane.b32.xlu0 %v251, 127
      %v262 = vpop.permute.xlu0 %261
      %263 = vrot.lane.b32.xlu0 %v252, 127
      %v264 = vpop.permute.xlu0 %263
      %v269 = vadd.f32 %v243, %v258
      %v270 = vadd.f32 %v244, %v260
      %v271 = vadd.f32 %v245, %v262
      %v272 = vadd.f32 %v246, %v264
      %s273 = sld [smem:[#allocation6 + $0x32]]
      %v274 = vstv %s273
      %v275 = vmul.f32 %v274, %v223
      %v276 = vmul.f32 %v274, %v224
      %v277 = vmul.f32 %v274, %v225
      %v278 = vmul.f32 %v274, %v226
      %283 = vrot.lane.b32.xlu0 %v275, 127
      %v284 = vpop.permute.xlu0 %283
      %285 = vrot.lane.b32.xlu0 %v276, 127
      %v286 = vpop.permute.xlu0 %285
      %287 = vrot.lane.b32.xlu0 %v277, 127
      %v288 = vpop.permute.xlu0 %287
      %289 = vrot.lane.b32.xlu0 %v278, 127
      %v290 = vpop.permute.xlu0 %289
      %v295 = vadd.f32 %v269, %v284
      %v296 = vadd.f32 %v270, %v286
      %v297 = vadd.f32 %v271, %v288
      %v298 = vadd.f32 %v272, %v290
      %s299 = sld [smem:[#allocation6 + $0x2]]
      %v300 = vstv %s299
      %v301 = vmul.f32 %v300, %v219
      %v302 = vmul.f32 %v300, %v220
      %v303 = vmul.f32 %v300, %v221
      %v304 = vmul.f32 %v300, %v222
      %309 = vrot.lane.b32.xlu0 %v301, 126
      %v310 = vpop.permute.xlu0 %309
      %311 = vrot.lane.b32.xlu0 %v302, 126
      %v312 = vpop.permute.xlu0 %311
      %313 = vrot.lane.b32.xlu0 %v303, 126
      %v314 = vpop.permute.xlu0 %313
      %315 = vrot.lane.b32.xlu0 %v304, 126
      %v316 = vpop.permute.xlu0 %315
      %v321 = vadd.f32 %v295, %v310
      %v322 = vadd.f32 %v296, %v312
      %v323 = vadd.f32 %v297, %v314
      %v324 = vadd.f32 %v298, %v316
      %s325 = sld [smem:[#allocation6 + $0x33]]
      %v326 = vstv %s325
      %v327 = vmul.f32 %v326, %v223
      %v328 = vmul.f32 %v326, %v224
      %v329 = vmul.f32 %v326, %v225
      %v330 = vmul.f32 %v326, %v226
      %335 = vrot.lane.b32.xlu0 %v327, 126
      %v336 = vpop.permute.xlu0 %335
      %337 = vrot.lane.b32.xlu0 %v328, 126
      %v338 = vpop.permute.xlu0 %337
      %339 = vrot.lane.b32.xlu0 %v329, 126
      %v340 = vpop.permute.xlu0 %339
      %341 = vrot.lane.b32.xlu0 %v330, 126
      %v342 = vpop.permute.xlu0 %341
      %v347 = vadd.f32 %v321, %v336
      %v348 = vadd.f32 %v322, %v338
      %v349 = vadd.f32 %v323, %v340
      %v350 = vadd.f32 %v324, %v342
      %s351 = sld [smem:[#allocation6 + $0x3]]
      %v352 = vstv %s351
      %v353 = vmul.f32 %v352, %v219
      %v354 = vmul.f32 %v352, %v220
      %v355 = vmul.f32 %v352, %v221
      %v356 = vmul.f32 %v352, %v222
      %361 = vrot.lane.b32.xlu0 %v353, 125
      %v362 = vpop.permute.xlu0 %361
      %363 = vrot.lane.b32.xlu0 %v354, 125
      %v364 = vpop.permute.xlu0 %363
      %365 = vrot.lane.b32.xlu0 %v355, 125
      %v366 = vpop.permute.xlu0 %365
      %367 = vrot.lane.b32.xlu0 %v356, 125
      %v368 = vpop.permute.xlu0 %367
      %v373 = vadd.f32 %v347, %v362
      %v374 = vadd.f32 %v348, %v364
      %v375 = vadd.f32 %v349, %v366
      %v376 = vadd.f32 %v350, %v368
      %s377 = sld [smem:[#allocation6 + $0x34]]
      %v378 = vstv %s377
      %v379 = vmul.f32 %v378, %v223
      %v380 = vmul.f32 %v378, %v224
      %v381 = vmul.f32 %v378, %v225
      %v382 = vmul.f32 %v378, %v226
      %387 = vrot.lane.b32.xlu0 %v379, 125
      %v388 = vpop.permute.xlu0 %387
      %389 = vrot.lane.b32.xlu0 %v380, 125
      %v390 = vpop.permute.xlu0 %389
      %391 = vrot.lane.b32.xlu0 %v381, 125
      %v392 = vpop.permute.xlu0 %391
      %393 = vrot.lane.b32.xlu0 %v382, 125
      %v394 = vpop.permute.xlu0 %393
      %v399 = vadd.f32 %v373, %v388
      %v400 = vadd.f32 %v374, %v390
      %v401 = vadd.f32 %v375, %v392
      %v402 = vadd.f32 %v376, %v394
      %s403 = sld [smem:[#allocation6 + $0x4]]
      %v404 = vstv %s403
      %v405 = vmul.f32 %v404, %v219
      %v406 = vmul.f32 %v404, %v220
      %v407 = vmul.f32 %v404, %v221
      %v408 = vmul.f32 %v404, %v222
      %413 = vrot.lane.b32.xlu0 %v405, 124
      %v414 = vpop.permute.xlu0 %413
      %415 = vrot.lane.b32.xlu0 %v406, 124
      %v416 = vpop.permute.xlu0 %415
      %417 = vrot.lane.b32.xlu0 %v407, 124
      %v418 = vpop.permute.xlu0 %417
      %419 = vrot.lane.b32.xlu0 %v408, 124
      %v420 = vpop.permute.xlu0 %419
      %v425 = vadd.f32 %v399, %v414
      %v426 = vadd.f32 %v400, %v416
      %v427 = vadd.f32 %v401, %v418
      %v428 = vadd.f32 %v402, %v420
      %s429 = sld [smem:[#allocation6 + $0x35]]
      %v430 = vstv %s429
      %v431 = vmul.f32 %v430, %v223
      %v432 = vmul.f32 %v430, %v224
      %v433 = vmul.f32 %v430, %v225
      %v434 = vmul.f32 %v430, %v226
      %439 = vrot.lane.b32.xlu0 %v431, 124
      %v440 = vpop.permute.xlu0 %439
      %441 = vrot.lane.b32.xlu0 %v432, 124
      %v442 = vpop.permute.xlu0 %441
      %443 = vrot.lane.b32.xlu0 %v433, 124
      %v444 = vpop.permute.xlu0 %443
      %445 = vrot.lane.b32.xlu0 %v434, 124
      %v446 = vpop.permute.xlu0 %445
      %v451 = vadd.f32 %v425, %v440
      %v452 = vadd.f32 %v426, %v442
      %v453 = vadd.f32 %v427, %v444
      %v454 = vadd.f32 %v428, %v446
      %s455 = sld [smem:[#allocation6 + $0x5]]
      %v456 = vstv %s455
      %v457 = vmul.f32 %v456, %v219
      %v458 = vmul.f32 %v456, %v220
      %v459 = vmul.f32 %v456, %v221
      %v460 = vmul.f32 %v456, %v222
      %465 = vrot.lane.b32.xlu0 %v457, 123
      %v466 = vpop.permute.xlu0 %465
      %467 = vrot.lane.b32.xlu0 %v458, 123
      %v468 = vpop.permute.xlu0 %467
      %469 = vrot.lane.b32.xlu0 %v459, 123
      %v470 = vpop.permute.xlu0 %469
      %471 = vrot.lane.b32.xlu0 %v460, 123
      %v472 = vpop.permute.xlu0 %471
      %v477 = vadd.f32 %v451, %v466
      %v478 = vadd.f32 %v452, %v468
      %v479 = vadd.f32 %v453, %v470
      %v480 = vadd.f32 %v454, %v472
      %s481 = sld [smem:[#allocation6 + $0x36]]
      %v482 = vstv %s481
      %v483 = vmul.f32 %v482, %v223
      %v484 = vmul.f32 %v482, %v224
      %v485 = vmul.f32 %v482, %v225
      %v486 = vmul.f32 %v482, %v226
      %491 = vrot.lane.b32.xlu0 %v483, 123
      %v492 = vpop.permute.xlu0 %491
      %493 = vrot.lane.b32.xlu0 %v484, 123
      %v494 = vpop.permute.xlu0 %493
      %495 = vrot.lane.b32.xlu0 %v485, 123
      %v496 = vpop.permute.xlu0 %495
      %497 = vrot.lane.b32.xlu0 %v486, 123
      %v498 = vpop.permute.xlu0 %497
      %v503 = vadd.f32 %v477, %v492
      %v504 = vadd.f32 %v478, %v494
      %v505 = vadd.f32 %v479, %v496
      %v506 = vadd.f32 %v480, %v498
      %s507 = sld [smem:[#allocation6 + $0x6]]
      %v508 = vstv %s507
      %v509 = vmul.f32 %v508, %v219
      %v510 = vmul.f32 %v508, %v220
      %v511 = vmul.f32 %v508, %v221
      %v512 = vmul.f32 %v508, %v222
      %517 = vrot.lane.b32.xlu0 %v509, 122
      %v518 = vpop.permute.xlu0 %517
      %519 = vrot.lane.b32.xlu0 %v510, 122
      %v520 = vpop.permute.xlu0 %519
      %521 = vrot.lane.b32.xlu0 %v511, 122
      %v522 = vpop.permute.xlu0 %521
      %523 = vrot.lane.b32.xlu0 %v512, 122
      %v524 = vpop.permute.xlu0 %523
      %v529 = vadd.f32 %v503, %v518
      %v530 = vadd.f32 %v504, %v520
      %v531 = vadd.f32 %v505, %v522
      %v532 = vadd.f32 %v506, %v524
      %s533 = sld [smem:[#allocation6 + $0x37]]
      %v534 = vstv %s533
      %v535 = vmul.f32 %v534, %v223
      %v536 = vmul.f32 %v534, %v224
      %v537 = vmul.f32 %v534, %v225
      %v538 = vmul.f32 %v534, %v226
      %543 = vrot.lane.b32.xlu0 %v535, 122
      %v544 = vpop.permute.xlu0 %543
      %545 = vrot.lane.b32.xlu0 %v536, 122
      %v546 = vpop.permute.xlu0 %545
      %547 = vrot.lane.b32.xlu0 %v537, 122
      %v548 = vpop.permute.xlu0 %547
      %549 = vrot.lane.b32.xlu0 %v538, 122
      %v550 = vpop.permute.xlu0 %549
      %v555 = vadd.f32 %v529, %v544
      %v556 = vadd.f32 %v530, %v546
      %v557 = vadd.f32 %v531, %v548
      %v558 = vadd.f32 %v532, %v550
      %559 = vst.msk [vmem:[#allocation5 + $0x3] sm:$0xff] %vm53, %v555
      %560 = vst.msk [vmem:[#allocation5 + $0xb] sm:$0xff] %vm53, %v556
      %561 = vst.msk [vmem:[#allocation5 + $0x1b] sm:$0xff] %vm53, %v557
      %562 = vst.msk [vmem:[#allocation5 + $0x23] sm:$0xff] %vm53, %v558
      %v563 = vld [vmem:[#allocation5] sm:$0xff]
      %v564 = vld [vmem:[#allocation5 + $0x8] sm:$0xff]
      %v565 = vld [vmem:[#allocation5 + $0x18] sm:$0xff]
      %v566 = vld [vmem:[#allocation5 + $0x20] sm:$0xff]
      %v567 = vadd.f32 %v563, 0.0
      %v568 = vadd.f32 %v564, 0.0
      %v569 = vadd.f32 %v565, 0.0
      %v570 = vadd.f32 %v566, 0.0
      %s571 = sld [smem:[#allocation6 + $0x7]]
      %v572 = vstv %s571
      %v573 = vmul.f32 %v572, %v219
      %v574 = vmul.f32 %v572, %v220
      %v575 = vmul.f32 %v572, %v221
      %v576 = vmul.f32 %v572, %v222
      %v577 = vadd.f32 %v573, 0.0
      %v578 = vadd.f32 %v574, 0.0
      %v579 = vadd.f32 %v575, 0.0
      %v580 = vadd.f32 %v576, 0.0
      %s581 = sld [smem:[#allocation6 + $0x38]]
      %v582 = vstv %s581
      %v583 = vmul.f32 %v582, %v223
      %v584 = vmul.f32 %v582, %v224
      %v585 = vmul.f32 %v582, %v225
      %v586 = vmul.f32 %v582, %v226
      %v587 = vadd.f32 %v577, %v583
      %v588 = vadd.f32 %v578, %v584
      %v589 = vadd.f32 %v579, %v585
      %v590 = vadd.f32 %v580, %v586
      %s591 = sld [smem:[#allocation6 + $0x8]]
      %v592 = vstv %s591
      %v593 = vmul.f32 %v592, %v219
      %v594 = vmul.f32 %v592, %v220
      %v595 = vmul.f32 %v592, %v221
      %v596 = vmul.f32 %v592, %v222
      %601 = vrot.lane.b32.xlu0 %v593, 127
      %v602 = vpop.permute.xlu0 %601
      %603 = vrot.lane.b32.xlu0 %v594, 127
      %v604 = vpop.permute.xlu0 %603
      %605 = vrot.lane.b32.xlu0 %v595, 127
      %v606 = vpop.permute.xlu0 %605
      %607 = vrot.lane.b32.xlu0 %v596, 127
      %v608 = vpop.permute.xlu0 %607
      %v613 = vadd.f32 %v587, %v602
      %v614 = vadd.f32 %v588, %v604
      %v615 = vadd.f32 %v589, %v606
      %v616 = vadd.f32 %v590, %v608
      %s617 = sld [smem:[#allocation6 + $0x39]]
      %v618 = vstv %s617
      %v619 = vmul.f32 %v618, %v223
      %v620 = vmul.f32 %v618, %v224
      %v621 = vmul.f32 %v618, %v225
      %v622 = vmul.f32 %v618, %v226
      %627 = vrot.lane.b32.xlu0 %v619, 127
      %v628 = vpop.permute.xlu0 %627
      %629 = vrot.lane.b32.xlu0 %v620, 127
      %v630 = vpop.permute.xlu0 %629
      %631 = vrot.lane.b32.xlu0 %v621, 127
      %v632 = vpop.permute.xlu0 %631
      %633 = vrot.lane.b32.xlu0 %v622, 127
      %v634 = vpop.permute.xlu0 %633
      %v639 = vadd.f32 %v613, %v628
      %v640 = vadd.f32 %v614, %v630
      %v641 = vadd.f32 %v615, %v632
      %v642 = vadd.f32 %v616, %v634
      %s643 = sld [smem:[#allocation6 + $0x9]]
      %v644 = vstv %s643
      %v645 = vmul.f32 %v644, %v219
      %v646 = vmul.f32 %v644, %v220
      %v647 = vmul.f32 %v644, %v221
      %v648 = vmul.f32 %v644, %v222
      %653 = vrot.lane.b32.xlu0 %v645, 126
      %v654 = vpop.permute.xlu0 %653
      %655 = vrot.lane.b32.xlu0 %v646, 126
      %v656 = vpop.permute.xlu0 %655
      %657 = vrot.lane.b32.xlu0 %v647, 126
      %v658 = vpop.permute.xlu0 %657
      %659 = vrot.lane.b32.xlu0 %v648, 126
      %v660 = vpop.permute.xlu0 %659
      %v665 = vadd.f32 %v639, %v654
      %v666 = vadd.f32 %v640, %v656
      %v667 = vadd.f32 %v641, %v658
      %v668 = vadd.f32 %v642, %v660
      %s669 = sld [smem:[#allocation6 + $0x3a]]
      %v670 = vstv %s669
      %v671 = vmul.f32 %v670, %v223
      %v672 = vmul.f32 %v670, %v224
      %v673 = vmul.f32 %v670, %v225
      %v674 = vmul.f32 %v670, %v226
      %679 = vrot.lane.b32.xlu0 %v671, 126
      %v680 = vpop.permute.xlu0 %679
      %681 = vrot.lane.b32.xlu0 %v672, 126
      %v682 = vpop.permute.xlu0 %681
      %683 = vrot.lane.b32.xlu0 %v673, 126
      %v684 = vpop.permute.xlu0 %683
      %685 = vrot.lane.b32.xlu0 %v674, 126
      %v686 = vpop.permute.xlu0 %685
      %v691 = vadd.f32 %v665, %v680
      %v692 = vadd.f32 %v666, %v682
      %v693 = vadd.f32 %v667, %v684
      %v694 = vadd.f32 %v668, %v686
      %s695 = sld [smem:[#allocation6 + $0xa]]
      %v696 = vstv %s695
      %v697 = vmul.f32 %v696, %v219
      %v698 = vmul.f32 %v696, %v220
      %v699 = vmul.f32 %v696, %v221
      %v700 = vmul.f32 %v696, %v222
      %705 = vrot.lane.b32.xlu0 %v697, 125
      %v706 = vpop.permute.xlu0 %705
      %707 = vrot.lane.b32.xlu0 %v698, 125
      %v708 = vpop.permute.xlu0 %707
      %709 = vrot.lane.b32.xlu0 %v699, 125
      %v710 = vpop.permute.xlu0 %709
      %711 = vrot.lane.b32.xlu0 %v700, 125
      %v712 = vpop.permute.xlu0 %711
      %v717 = vadd.f32 %v691, %v706
      %v718 = vadd.f32 %v692, %v708
      %v719 = vadd.f32 %v693, %v710
      %v720 = vadd.f32 %v694, %v712
      %s721 = sld [smem:[#allocation6 + $0x3b]]
      %v722 = vstv %s721
      %v723 = vmul.f32 %v722, %v223
      %v724 = vmul.f32 %v722, %v224
      %v725 = vmul.f32 %v722, %v225
      %v726 = vmul.f32 %v722, %v226
      %731 = vrot.lane.b32.xlu0 %v723, 125
      %v732 = vpop.permute.xlu0 %731
      %733 = vrot.lane.b32.xlu0 %v724, 125
      %v734 = vpop.permute.xlu0 %733
      %735 = vrot.lane.b32.xlu0 %v725, 125
      %v736 = vpop.permute.xlu0 %735
      %737 = vrot.lane.b32.xlu0 %v726, 125
      %v738 = vpop.permute.xlu0 %737
      %v743 = vadd.f32 %v717, %v732
      %v744 = vadd.f32 %v718, %v734
      %v745 = vadd.f32 %v719, %v736
      %v746 = vadd.f32 %v720, %v738
      %s747 = sld [smem:[#allocation6 + $0xb]]
      %v748 = vstv %s747
      %v749 = vmul.f32 %v748, %v219
      %v750 = vmul.f32 %v748, %v220
      %v751 = vmul.f32 %v748, %v221
      %v752 = vmul.f32 %v748, %v222
      %757 = vrot.lane.b32.xlu0 %v749, 124
      %v758 = vpop.permute.xlu0 %757
      %759 = vrot.lane.b32.xlu0 %v750, 124
      %v760 = vpop.permute.xlu0 %759
      %761 = vrot.lane.b32.xlu0 %v751, 124
      %v762 = vpop.permute.xlu0 %761
      %763 = vrot.lane.b32.xlu0 %v752, 124
      %v764 = vpop.permute.xlu0 %763
      %v769 = vadd.f32 %v743, %v758
      %v770 = vadd.f32 %v744, %v760
      %v771 = vadd.f32 %v745, %v762
      %v772 = vadd.f32 %v746, %v764
      %s773 = sld [smem:[#allocation6 + $0x3c]]
      %v774 = vstv %s773
      %v775 = vmul.f32 %v774, %v223
      %v776 = vmul.f32 %v774, %v224
      %v777 = vmul.f32 %v774, %v225
      %v778 = vmul.f32 %v774, %v226
      %783 = vrot.lane.b32.xlu0 %v775, 124
      %v784 = vpop.permute.xlu0 %783
      %785 = vrot.lane.b32.xlu0 %v776, 124
      %v786 = vpop.permute.xlu0 %785
      %787 = vrot.lane.b32.xlu0 %v777, 124
      %v788 = vpop.permute.xlu0 %787
      %789 = vrot.lane.b32.xlu0 %v778, 124
      %v790 = vpop.permute.xlu0 %789
      %v795 = vadd.f32 %v769, %v784
      %v796 = vadd.f32 %v770, %v786
      %v797 = vadd.f32 %v771, %v788
      %v798 = vadd.f32 %v772, %v790
      %s799 = sld [smem:[#allocation6 + $0xc]]
      %v800 = vstv %s799
      %v801 = vmul.f32 %v800, %v219
      %v802 = vmul.f32 %v800, %v220
      %v803 = vmul.f32 %v800, %v221
      %v804 = vmul.f32 %v800, %v222
      %809 = vrot.lane.b32.xlu0 %v801, 123
      %v810 = vpop.permute.xlu0 %809
      %811 = vrot.lane.b32.xlu0 %v802, 123
      %v812 = vpop.permute.xlu0 %811
      %813 = vrot.lane.b32.xlu0 %v803, 123
      %v814 = vpop.permute.xlu0 %813
      %815 = vrot.lane.b32.xlu0 %v804, 123
      %v816 = vpop.permute.xlu0 %815
      %v821 = vadd.f32 %v795, %v810
      %v822 = vadd.f32 %v796, %v812
      %v823 = vadd.f32 %v797, %v814
      %v824 = vadd.f32 %v798, %v816
      %s825 = sld [smem:[#allocation6 + $0x3d]]
      %v826 = vstv %s825
      %v827 = vmul.f32 %v826, %v223
      %v828 = vmul.f32 %v826, %v224
      %v829 = vmul.f32 %v826, %v225
      %v830 = vmul.f32 %v826, %v226
      %835 = vrot.lane.b32.xlu0 %v827, 123
      %v836 = vpop.permute.xlu0 %835
      %837 = vrot.lane.b32.xlu0 %v828, 123
      %v838 = vpop.permute.xlu0 %837
      %839 = vrot.lane.b32.xlu0 %v829, 123
      %v840 = vpop.permute.xlu0 %839
      %841 = vrot.lane.b32.xlu0 %v830, 123
      %v842 = vpop.permute.xlu0 %841
      %v847 = vadd.f32 %v821, %v836
      %v848 = vadd.f32 %v822, %v838
      %v849 = vadd.f32 %v823, %v840
      %v850 = vadd.f32 %v824, %v842
      %s851 = sld [smem:[#allocation6 + $0xd]]
      %v852 = vstv %s851
      %v853 = vmul.f32 %v852, %v219
      %v854 = vmul.f32 %v852, %v220
      %v855 = vmul.f32 %v852, %v221
      %v856 = vmul.f32 %v852, %v222
      %861 = vrot.lane.b32.xlu0 %v853, 122
      %v862 = vpop.permute.xlu0 %861
      %863 = vrot.lane.b32.xlu0 %v854, 122
      %v864 = vpop.permute.xlu0 %863
      %865 = vrot.lane.b32.xlu0 %v855, 122
      %v866 = vpop.permute.xlu0 %865
      %867 = vrot.lane.b32.xlu0 %v856, 122
      %v868 = vpop.permute.xlu0 %867
      %v873 = vadd.f32 %v847, %v862
      %v874 = vadd.f32 %v848, %v864
      %v875 = vadd.f32 %v849, %v866
      %v876 = vadd.f32 %v850, %v868
      %s877 = sld [smem:[#allocation6 + $0x3e]]
      %v878 = vstv %s877
      %v879 = vmul.f32 %v878, %v223
      %v880 = vmul.f32 %v878, %v224
      %v881 = vmul.f32 %v878, %v225
      %v882 = vmul.f32 %v878, %v226
      %887 = vrot.lane.b32.xlu0 %v879, 122
      %v888 = vpop.permute.xlu0 %887
      %889 = vrot.lane.b32.xlu0 %v880, 122
      %v890 = vpop.permute.xlu0 %889
      %891 = vrot.lane.b32.xlu0 %v881, 122
      %v892 = vpop.permute.xlu0 %891
      %893 = vrot.lane.b32.xlu0 %v882, 122
      %v894 = vpop.permute.xlu0 %893
      %v899 = vadd.f32 %v873, %v888
      %v900 = vadd.f32 %v874, %v890
      %v901 = vadd.f32 %v875, %v892
      %v902 = vadd.f32 %v876, %v894
      %903 = vst.msk [vmem:[#allocation5 + $0x3] sm:$0xff] %vm53, %v899
      %904 = vst.msk [vmem:[#allocation5 + $0xb] sm:$0xff] %vm53, %v900
      %905 = vst.msk [vmem:[#allocation5 + $0x1b] sm:$0xff] %vm53, %v901
      %906 = vst.msk [vmem:[#allocation5 + $0x23] sm:$0xff] %vm53, %v902
      %v907 = vld [vmem:[#allocation5 + $0x1] sm:$0xff]
      %v908 = vld [vmem:[#allocation5 + $0x9] sm:$0xff]
      %v909 = vld [vmem:[#allocation5 + $0x19] sm:$0xff]
      %v910 = vld [vmem:[#allocation5 + $0x21] sm:$0xff]
      %v911 = vadd.f32 %v567, %v907
      %v912 = vadd.f32 %v568, %v908
      %v913 = vadd.f32 %v569, %v909
      %v914 = vadd.f32 %v570, %v910
      %s915 = sld [smem:[#allocation6 + $0xe]]
      %v916 = vstv %s915
      %v917 = vmul.f32 %v916, %v219
      %v918 = vmul.f32 %v916, %v220
      %v919 = vmul.f32 %v916, %v221
      %v920 = vmul.f32 %v916, %v222
      %v921 = vadd.f32 %v917, 0.0
      %v922 = vadd.f32 %v918, 0.0
      %v923 = vadd.f32 %v919, 0.0
      %v924 = vadd.f32 %v920, 0.0
      %s925 = sld [smem:[#allocation6 + $0x3f]]
      %v926 = vstv %s925
      %v927 = vmul.f32 %v926, %v223
      %v928 = vmul.f32 %v926, %v224
      %v929 = vmul.f32 %v926, %v225
      %v930 = vmul.f32 %v926, %v226
      %v931 = vadd.f32 %v921, %v927
      %v932 = vadd.f32 %v922, %v928
      %v933 = vadd.f32 %v923, %v929
      %v934 = vadd.f32 %v924, %v930
      %s935 = sld [smem:[#allocation6 + $0xf]]
      %v936 = vstv %s935
      %v937 = vmul.f32 %v936, %v219
      %v938 = vmul.f32 %v936, %v220
      %v939 = vmul.f32 %v936, %v221
      %v940 = vmul.f32 %v936, %v222
      %945 = vrot.lane.b32.xlu0 %v937, 127
      %v946 = vpop.permute.xlu0 %945
      %947 = vrot.lane.b32.xlu0 %v938, 127
      %v948 = vpop.permute.xlu0 %947
      %949 = vrot.lane.b32.xlu0 %v939, 127
      %v950 = vpop.permute.xlu0 %949
      %951 = vrot.lane.b32.xlu0 %v940, 127
      %v952 = vpop.permute.xlu0 %951
      %v957 = vadd.f32 %v931, %v946
      %v958 = vadd.f32 %v932, %v948
      %v959 = vadd.f32 %v933, %v950
      %v960 = vadd.f32 %v934, %v952
      %s961 = sld [smem:[#allocation6 + $0x40]]
      %v962 = vstv %s961
      %v963 = vmul.f32 %v962, %v223
      %v964 = vmul.f32 %v962, %v224
      %v965 = vmul.f32 %v962, %v225
      %v966 = vmul.f32 %v962, %v226
      %971 = vrot.lane.b32.xlu0 %v963, 127
      %v972 = vpop.permute.xlu0 %971
      %973 = vrot.lane.b32.xlu0 %v964, 127
      %v974 = vpop.permute.xlu0 %973
      %975 = vrot.lane.b32.xlu0 %v965, 127
      %v976 = vpop.permute.xlu0 %975
      %977 = vrot.lane.b32.xlu0 %v966, 127
      %v978 = vpop.permute.xlu0 %977
      %v983 = vadd.f32 %v957, %v972
      %v984 = vadd.f32 %v958, %v974
      %v985 = vadd.f32 %v959, %v976
      %v986 = vadd.f32 %v960, %v978
      %s987 = sld [smem:[#allocation6 + $0x10]]
      %v988 = vstv %s987
      %v989 = vmul.f32 %v988, %v219
      %v990 = vmul.f32 %v988, %v220
      %v991 = vmul.f32 %v988, %v221
      %v992 = vmul.f32 %v988, %v222
      %997 = vrot.lane.b32.xlu0 %v989, 126
      %v998 = vpop.permute.xlu0 %997
      %999 = vrot.lane.b32.xlu0 %v990, 126
      %v1000 = vpop.permute.xlu0 %999
      %1001 = vrot.lane.b32.xlu0 %v991, 126
      %v1002 = vpop.permute.xlu0 %1001
      %1003 = vrot.lane.b32.xlu0 %v992, 126
      %v1004 = vpop.permute.xlu0 %1003
      %v1009 = vadd.f32 %v983, %v998
      %v1010 = vadd.f32 %v984, %v1000
      %v1011 = vadd.f32 %v985, %v1002
      %v1012 = vadd.f32 %v986, %v1004
      %s1013 = sld [smem:[#allocation6 + $0x41]]
      %v1014 = vstv %s1013
      %v1015 = vmul.f32 %v1014, %v223
      %v1016 = vmul.f32 %v1014, %v224
      %v1017 = vmul.f32 %v1014, %v225
      %v1018 = vmul.f32 %v1014, %v226
      %1023 = vrot.lane.b32.xlu0 %v1015, 126
      %v1024 = vpop.permute.xlu0 %1023
      %1025 = vrot.lane.b32.xlu0 %v1016, 126
      %v1026 = vpop.permute.xlu0 %1025
      %1027 = vrot.lane.b32.xlu0 %v1017, 126
      %v1028 = vpop.permute.xlu0 %1027
      %1029 = vrot.lane.b32.xlu0 %v1018, 126
      %v1030 = vpop.permute.xlu0 %1029
      %v1035 = vadd.f32 %v1009, %v1024
      %v1036 = vadd.f32 %v1010, %v1026
      %v1037 = vadd.f32 %v1011, %v1028
      %v1038 = vadd.f32 %v1012, %v1030
      %s1039 = sld [smem:[#allocation6 + $0x11]]
      %v1040 = vstv %s1039
      %v1041 = vmul.f32 %v1040, %v219
      %v1042 = vmul.f32 %v1040, %v220
      %v1043 = vmul.f32 %v1040, %v221
      %v1044 = vmul.f32 %v1040, %v222
      %1049 = vrot.lane.b32.xlu0 %v1041, 125
      %v1050 = vpop.permute.xlu0 %1049
      %1051 = vrot.lane.b32.xlu0 %v1042, 125
      %v1052 = vpop.permute.xlu0 %1051
      %1053 = vrot.lane.b32.xlu0 %v1043, 125
      %v1054 = vpop.permute.xlu0 %1053
      %1055 = vrot.lane.b32.xlu0 %v1044, 125
      %v1056 = vpop.permute.xlu0 %1055
      %v1061 = vadd.f32 %v1035, %v1050
      %v1062 = vadd.f32 %v1036, %v1052
      %v1063 = vadd.f32 %v1037, %v1054
      %v1064 = vadd.f32 %v1038, %v1056
      %s1065 = sld [smem:[#allocation6 + $0x42]]
      %v1066 = vstv %s1065
      %v1067 = vmul.f32 %v1066, %v223
      %v1068 = vmul.f32 %v1066, %v224
      %v1069 = vmul.f32 %v1066, %v225
      %v1070 = vmul.f32 %v1066, %v226
      %1075 = vrot.lane.b32.xlu0 %v1067, 125
      %v1076 = vpop.permute.xlu0 %1075
      %1077 = vrot.lane.b32.xlu0 %v1068, 125
      %v1078 = vpop.permute.xlu0 %1077
      %1079 = vrot.lane.b32.xlu0 %v1069, 125
      %v1080 = vpop.permute.xlu0 %1079
      %1081 = vrot.lane.b32.xlu0 %v1070, 125
      %v1082 = vpop.permute.xlu0 %1081
      %v1087 = vadd.f32 %v1061, %v1076
      %v1088 = vadd.f32 %v1062, %v1078
      %v1089 = vadd.f32 %v1063, %v1080
      %v1090 = vadd.f32 %v1064, %v1082
      %s1091 = sld [smem:[#allocation6 + $0x12]]
      %v1092 = vstv %s1091
      %v1093 = vmul.f32 %v1092, %v219
      %v1094 = vmul.f32 %v1092, %v220
      %v1095 = vmul.f32 %v1092, %v221
      %v1096 = vmul.f32 %v1092, %v222
      %1101 = vrot.lane.b32.xlu0 %v1093, 124
      %v1102 = vpop.permute.xlu0 %1101
      %1103 = vrot.lane.b32.xlu0 %v1094, 124
      %v1104 = vpop.permute.xlu0 %1103
      %1105 = vrot.lane.b32.xlu0 %v1095, 124
      %v1106 = vpop.permute.xlu0 %1105
      %1107 = vrot.lane.b32.xlu0 %v1096, 124
      %v1108 = vpop.permute.xlu0 %1107
      %v1113 = vadd.f32 %v1087, %v1102
      %v1114 = vadd.f32 %v1088, %v1104
      %v1115 = vadd.f32 %v1089, %v1106
      %v1116 = vadd.f32 %v1090, %v1108
      %s1117 = sld [smem:[#allocation6 + $0x43]]
      %v1118 = vstv %s1117
      %v1119 = vmul.f32 %v1118, %v223
      %v1120 = vmul.f32 %v1118, %v224
      %v1121 = vmul.f32 %v1118, %v225
      %v1122 = vmul.f32 %v1118, %v226
      %1127 = vrot.lane.b32.xlu0 %v1119, 124
      %v1128 = vpop.permute.xlu0 %1127
      %1129 = vrot.lane.b32.xlu0 %v1120, 124
      %v1130 = vpop.permute.xlu0 %1129
      %1131 = vrot.lane.b32.xlu0 %v1121, 124
      %v1132 = vpop.permute.xlu0 %1131
      %1133 = vrot.lane.b32.xlu0 %v1122, 124
      %v1134 = vpop.permute.xlu0 %1133
      %v1139 = vadd.f32 %v1113, %v1128
      %v1140 = vadd.f32 %v1114, %v1130
      %v1141 = vadd.f32 %v1115, %v1132
      %v1142 = vadd.f32 %v1116, %v1134
      %s1143 = sld [smem:[#allocation6 + $0x13]]
      %v1144 = vstv %s1143
      %v1145 = vmul.f32 %v1144, %v219
      %v1146 = vmul.f32 %v1144, %v220
      %v1147 = vmul.f32 %v1144, %v221
      %v1148 = vmul.f32 %v1144, %v222
      %1153 = vrot.lane.b32.xlu0 %v1145, 123
      %v1154 = vpop.permute.xlu0 %1153
      %1155 = vrot.lane.b32.xlu0 %v1146, 123
      %v1156 = vpop.permute.xlu0 %1155
      %1157 = vrot.lane.b32.xlu0 %v1147, 123
      %v1158 = vpop.permute.xlu0 %1157
      %1159 = vrot.lane.b32.xlu0 %v1148, 123
      %v1160 = vpop.permute.xlu0 %1159
      %v1165 = vadd.f32 %v1139, %v1154
      %v1166 = vadd.f32 %v1140, %v1156
      %v1167 = vadd.f32 %v1141, %v1158
      %v1168 = vadd.f32 %v1142, %v1160
      %s1169 = sld [smem:[#allocation6 + $0x44]]
      %v1170 = vstv %s1169
      %v1171 = vmul.f32 %v1170, %v223
      %v1172 = vmul.f32 %v1170, %v224
      %v1173 = vmul.f32 %v1170, %v225
      %v1174 = vmul.f32 %v1170, %v226
      %1179 = vrot.lane.b32.xlu0 %v1171, 123
      %v1180 = vpop.permute.xlu0 %1179
      %1181 = vrot.lane.b32.xlu0 %v1172, 123
      %v1182 = vpop.permute.xlu0 %1181
      %1183 = vrot.lane.b32.xlu0 %v1173, 123
      %v1184 = vpop.permute.xlu0 %1183
      %1185 = vrot.lane.b32.xlu0 %v1174, 123
      %v1186 = vpop.permute.xlu0 %1185
      %v1191 = vadd.f32 %v1165, %v1180
      %v1192 = vadd.f32 %v1166, %v1182
      %v1193 = vadd.f32 %v1167, %v1184
      %v1194 = vadd.f32 %v1168, %v1186
      %s1195 = sld [smem:[#allocation6 + $0x14]]
      %v1196 = vstv %s1195
      %v1197 = vmul.f32 %v1196, %v219
      %v1198 = vmul.f32 %v1196, %v220
      %v1199 = vmul.f32 %v1196, %v221
      %v1200 = vmul.f32 %v1196, %v222
      %1205 = vrot.lane.b32.xlu0 %v1197, 122
      %v1206 = vpop.permute.xlu0 %1205
      %1207 = vrot.lane.b32.xlu0 %v1198, 122
      %v1208 = vpop.permute.xlu0 %1207
      %1209 = vrot.lane.b32.xlu0 %v1199, 122
      %v1210 = vpop.permute.xlu0 %1209
      %1211 = vrot.lane.b32.xlu0 %v1200, 122
      %v1212 = vpop.permute.xlu0 %1211
      %v1217 = vadd.f32 %v1191, %v1206
      %v1218 = vadd.f32 %v1192, %v1208
      %v1219 = vadd.f32 %v1193, %v1210
      %v1220 = vadd.f32 %v1194, %v1212
      %s1221 = sld [smem:[#allocation6 + $0x45]]
      %v1222 = vstv %s1221
      %v1223 = vmul.f32 %v1222, %v223
      %v1224 = vmul.f32 %v1222, %v224
      %v1225 = vmul.f32 %v1222, %v225
      %v1226 = vmul.f32 %v1222, %v226
      %1231 = vrot.lane.b32.xlu0 %v1223, 122
      %v1232 = vpop.permute.xlu0 %1231
      %1233 = vrot.lane.b32.xlu0 %v1224, 122
      %v1234 = vpop.permute.xlu0 %1233
      %1235 = vrot.lane.b32.xlu0 %v1225, 122
      %v1236 = vpop.permute.xlu0 %1235
      %1237 = vrot.lane.b32.xlu0 %v1226, 122
      %v1238 = vpop.permute.xlu0 %1237
      %v1243 = vadd.f32 %v1217, %v1232
      %v1244 = vadd.f32 %v1218, %v1234
      %v1245 = vadd.f32 %v1219, %v1236
      %v1246 = vadd.f32 %v1220, %v1238
      %1247 = vst.msk [vmem:[#allocation5 + $0x3] sm:$0xff] %vm53, %v1243
      %1248 = vst.msk [vmem:[#allocation5 + $0xb] sm:$0xff] %vm53, %v1244
      %1249 = vst.msk [vmem:[#allocation5 + $0x1b] sm:$0xff] %vm53, %v1245
      %1250 = vst.msk [vmem:[#allocation5 + $0x23] sm:$0xff] %vm53, %v1246
      %v1251 = vld [vmem:[#allocation5 + $0x2] sm:$0xff]
      %v1252 = vld [vmem:[#allocation5 + $0xa] sm:$0xff]
      %v1253 = vld [vmem:[#allocation5 + $0x1a] sm:$0xff]
      %v1254 = vld [vmem:[#allocation5 + $0x22] sm:$0xff]
      %v1255 = vadd.f32 %v911, %v1251
      %v1256 = vadd.f32 %v912, %v1252
      %v1257 = vadd.f32 %v913, %v1253
      %v1258 = vadd.f32 %v914, %v1254
      %s1259 = sld [smem:[#allocation6 + $0x15]]
      %v1260 = vstv %s1259
      %v1261 = vmul.f32 %v1260, %v219
      %v1262 = vmul.f32 %v1260, %v220
      %v1263 = vmul.f32 %v1260, %v221
      %v1264 = vmul.f32 %v1260, %v222
      %v1265 = vadd.f32 %v1261, 0.0
      %v1266 = vadd.f32 %v1262, 0.0
      %v1267 = vadd.f32 %v1263, 0.0
      %v1268 = vadd.f32 %v1264, 0.0
      %s1269 = sld [smem:[#allocation6 + $0x46]]
      %v1270 = vstv %s1269
      %v1271 = vmul.f32 %v1270, %v223
      %v1272 = vmul.f32 %v1270, %v224
      %v1273 = vmul.f32 %v1270, %v225
      %v1274 = vmul.f32 %v1270, %v226
      %v1275 = vadd.f32 %v1265, %v1271
      %v1276 = vadd.f32 %v1266, %v1272
      %v1277 = vadd.f32 %v1267, %v1273
      %v1278 = vadd.f32 %v1268, %v1274
      %s1279 = sld [smem:[#allocation6 + $0x16]]
      %v1280 = vstv %s1279
      %v1281 = vmul.f32 %v1280, %v219
      %v1282 = vmul.f32 %v1280, %v220
      %v1283 = vmul.f32 %v1280, %v221
      %v1284 = vmul.f32 %v1280, %v222
      %1289 = vrot.lane.b32.xlu0 %v1281, 127
      %v1290 = vpop.permute.xlu0 %1289
      %1291 = vrot.lane.b32.xlu0 %v1282, 127
      %v1292 = vpop.permute.xlu0 %1291
      %1293 = vrot.lane.b32.xlu0 %v1283, 127
      %v1294 = vpop.permute.xlu0 %1293
      %1295 = vrot.lane.b32.xlu0 %v1284, 127
      %v1296 = vpop.permute.xlu0 %1295
      %v1301 = vadd.f32 %v1275, %v1290
      %v1302 = vadd.f32 %v1276, %v1292
      %v1303 = vadd.f32 %v1277, %v1294
      %v1304 = vadd.f32 %v1278, %v1296
      %s1305 = sld [smem:[#allocation6 + $0x47]]
      %v1306 = vstv %s1305
      %v1307 = vmul.f32 %v1306, %v223
      %v1308 = vmul.f32 %v1306, %v224
      %v1309 = vmul.f32 %v1306, %v225
      %v1310 = vmul.f32 %v1306, %v226
      %1315 = vrot.lane.b32.xlu0 %v1307, 127
      %v1316 = vpop.permute.xlu0 %1315
      %1317 = vrot.lane.b32.xlu0 %v1308, 127
      %v1318 = vpop.permute.xlu0 %1317
      %1319 = vrot.lane.b32.xlu0 %v1309, 127
      %v1320 = vpop.permute.xlu0 %1319
      %1321 = vrot.lane.b32.xlu0 %v1310, 127
      %v1322 = vpop.permute.xlu0 %1321
      %v1327 = vadd.f32 %v1301, %v1316
      %v1328 = vadd.f32 %v1302, %v1318
      %v1329 = vadd.f32 %v1303, %v1320
      %v1330 = vadd.f32 %v1304, %v1322
      %s1331 = sld [smem:[#allocation6 + $0x17]]
      %v1332 = vstv %s1331
      %v1333 = vmul.f32 %v1332, %v219
      %v1334 = vmul.f32 %v1332, %v220
      %v1335 = vmul.f32 %v1332, %v221
      %v1336 = vmul.f32 %v1332, %v222
      %1341 = vrot.lane.b32.xlu0 %v1333, 126
      %v1342 = vpop.permute.xlu0 %1341
      %1343 = vrot.lane.b32.xlu0 %v1334, 126
      %v1344 = vpop.permute.xlu0 %1343
      %1345 = vrot.lane.b32.xlu0 %v1335, 126
      %v1346 = vpop.permute.xlu0 %1345
      %1347 = vrot.lane.b32.xlu0 %v1336, 126
      %v1348 = vpop.permute.xlu0 %1347
      %v1353 = vadd.f32 %v1327, %v1342
      %v1354 = vadd.f32 %v1328, %v1344
      %v1355 = vadd.f32 %v1329, %v1346
      %v1356 = vadd.f32 %v1330, %v1348
      %s1357 = sld [smem:[#allocation6 + $0x48]]
      %v1358 = vstv %s1357
      %v1359 = vmul.f32 %v1358, %v223
      %v1360 = vmul.f32 %v1358, %v224
      %v1361 = vmul.f32 %v1358, %v225
      %v1362 = vmul.f32 %v1358, %v226
      %1367 = vrot.lane.b32.xlu0 %v1359, 126
      %v1368 = vpop.permute.xlu0 %1367
      %1369 = vrot.lane.b32.xlu0 %v1360, 126
      %v1370 = vpop.permute.xlu0 %1369
      %1371 = vrot.lane.b32.xlu0 %v1361, 126
      %v1372 = vpop.permute.xlu0 %1371
      %1373 = vrot.lane.b32.xlu0 %v1362, 126
      %v1374 = vpop.permute.xlu0 %1373
      %v1379 = vadd.f32 %v1353, %v1368
      %v1380 = vadd.f32 %v1354, %v1370
      %v1381 = vadd.f32 %v1355, %v1372
      %v1382 = vadd.f32 %v1356, %v1374
      %s1383 = sld [smem:[#allocation6 + $0x18]]
      %v1384 = vstv %s1383
      %v1385 = vmul.f32 %v1384, %v219
      %v1386 = vmul.f32 %v1384, %v220
      %v1387 = vmul.f32 %v1384, %v221
      %v1388 = vmul.f32 %v1384, %v222
      %1393 = vrot.lane.b32.xlu0 %v1385, 125
      %v1394 = vpop.permute.xlu0 %1393
      %1395 = vrot.lane.b32.xlu0 %v1386, 125
      %v1396 = vpop.permute.xlu0 %1395
      %1397 = vrot.lane.b32.xlu0 %v1387, 125
      %v1398 = vpop.permute.xlu0 %1397
      %1399 = vrot.lane.b32.xlu0 %v1388, 125
      %v1400 = vpop.permute.xlu0 %1399
      %v1405 = vadd.f32 %v1379, %v1394
      %v1406 = vadd.f32 %v1380, %v1396
      %v1407 = vadd.f32 %v1381, %v1398
      %v1408 = vadd.f32 %v1382, %v1400
      %s1409 = sld [smem:[#allocation6 + $0x49]]
      %v1410 = vstv %s1409
      %v1411 = vmul.f32 %v1410, %v223
      %v1412 = vmul.f32 %v1410, %v224
      %v1413 = vmul.f32 %v1410, %v225
      %v1414 = vmul.f32 %v1410, %v226
      %1419 = vrot.lane.b32.xlu0 %v1411, 125
      %v1420 = vpop.permute.xlu0 %1419
      %1421 = vrot.lane.b32.xlu0 %v1412, 125
      %v1422 = vpop.permute.xlu0 %1421
      %1423 = vrot.lane.b32.xlu0 %v1413, 125
      %v1424 = vpop.permute.xlu0 %1423
      %1425 = vrot.lane.b32.xlu0 %v1414, 125
      %v1426 = vpop.permute.xlu0 %1425
      %v1431 = vadd.f32 %v1405, %v1420
      %v1432 = vadd.f32 %v1406, %v1422
      %v1433 = vadd.f32 %v1407, %v1424
      %v1434 = vadd.f32 %v1408, %v1426
      %s1435 = sld [smem:[#allocation6 + $0x19]]
      %v1436 = vstv %s1435
      %v1437 = vmul.f32 %v1436, %v219
      %v1438 = vmul.f32 %v1436, %v220
      %v1439 = vmul.f32 %v1436, %v221
      %v1440 = vmul.f32 %v1436, %v222
      %1445 = vrot.lane.b32.xlu0 %v1437, 124
      %v1446 = vpop.permute.xlu0 %1445
      %1447 = vrot.lane.b32.xlu0 %v1438, 124
      %v1448 = vpop.permute.xlu0 %1447
      %1449 = vrot.lane.b32.xlu0 %v1439, 124
      %v1450 = vpop.permute.xlu0 %1449
      %1451 = vrot.lane.b32.xlu0 %v1440, 124
      %v1452 = vpop.permute.xlu0 %1451
      %v1457 = vadd.f32 %v1431, %v1446
      %v1458 = vadd.f32 %v1432, %v1448
      %v1459 = vadd.f32 %v1433, %v1450
      %v1460 = vadd.f32 %v1434, %v1452
      %s1461 = sld [smem:[#allocation6 + $0x4a]]
      %v1462 = vstv %s1461
      %v1463 = vmul.f32 %v1462, %v223
      %v1464 = vmul.f32 %v1462, %v224
      %v1465 = vmul.f32 %v1462, %v225
      %v1466 = vmul.f32 %v1462, %v226
      %1471 = vrot.lane.b32.xlu0 %v1463, 124
      %v1472 = vpop.permute.xlu0 %1471
      %1473 = vrot.lane.b32.xlu0 %v1464, 124
      %v1474 = vpop.permute.xlu0 %1473
      %1475 = vrot.lane.b32.xlu0 %v1465, 124
      %v1476 = vpop.permute.xlu0 %1475
      %1477 = vrot.lane.b32.xlu0 %v1466, 124
      %v1478 = vpop.permute.xlu0 %1477
      %v1483 = vadd.f32 %v1457, %v1472
      %v1484 = vadd.f32 %v1458, %v1474
      %v1485 = vadd.f32 %v1459, %v1476
      %v1486 = vadd.f32 %v1460, %v1478
      %s1487 = sld [smem:[#allocation6 + $0x1a]]
      %v1488 = vstv %s1487
      %v1489 = vmul.f32 %v1488, %v219
      %v1490 = vmul.f32 %v1488, %v220
      %v1491 = vmul.f32 %v1488, %v221
      %v1492 = vmul.f32 %v1488, %v222
      %1497 = vrot.lane.b32.xlu0 %v1489, 123
      %v1498 = vpop.permute.xlu0 %1497
      %1499 = vrot.lane.b32.xlu0 %v1490, 123
      %v1500 = vpop.permute.xlu0 %1499
      %1501 = vrot.lane.b32.xlu0 %v1491, 123
      %v1502 = vpop.permute.xlu0 %1501
      %1503 = vrot.lane.b32.xlu0 %v1492, 123
      %v1504 = vpop.permute.xlu0 %1503
      %v1509 = vadd.f32 %v1483, %v1498
      %v1510 = vadd.f32 %v1484, %v1500
      %v1511 = vadd.f32 %v1485, %v1502
      %v1512 = vadd.f32 %v1486, %v1504
      %s1513 = sld [smem:[#allocation6 + $0x4b]]
      %v1514 = vstv %s1513
      %v1515 = vmul.f32 %v1514, %v223
      %v1516 = vmul.f32 %v1514, %v224
      %v1517 = vmul.f32 %v1514, %v225
      %v1518 = vmul.f32 %v1514, %v226
      %1523 = vrot.lane.b32.xlu0 %v1515, 123
      %v1524 = vpop.permute.xlu0 %1523
      %1525 = vrot.lane.b32.xlu0 %v1516, 123
      %v1526 = vpop.permute.xlu0 %1525
      %1527 = vrot.lane.b32.xlu0 %v1517, 123
      %v1528 = vpop.permute.xlu0 %1527
      %1529 = vrot.lane.b32.xlu0 %v1518, 123
      %v1530 = vpop.permute.xlu0 %1529
      %v1535 = vadd.f32 %v1509, %v1524
      %v1536 = vadd.f32 %v1510, %v1526
      %v1537 = vadd.f32 %v1511, %v1528
      %v1538 = vadd.f32 %v1512, %v1530
      %s1539 = sld [smem:[#allocation6 + $0x1b]]
      %v1540 = vstv %s1539
      %v1541 = vmul.f32 %v1540, %v219
      %v1542 = vmul.f32 %v1540, %v220
      %v1543 = vmul.f32 %v1540, %v221
      %v1544 = vmul.f32 %v1540, %v222
      %1549 = vrot.lane.b32.xlu0 %v1541, 122
      %v1550 = vpop.permute.xlu0 %1549
      %1551 = vrot.lane.b32.xlu0 %v1542, 122
      %v1552 = vpop.permute.xlu0 %1551
      %1553 = vrot.lane.b32.xlu0 %v1543, 122
      %v1554 = vpop.permute.xlu0 %1553
      %1555 = vrot.lane.b32.xlu0 %v1544, 122
      %v1556 = vpop.permute.xlu0 %1555
      %v1561 = vadd.f32 %v1535, %v1550
      %v1562 = vadd.f32 %v1536, %v1552
      %v1563 = vadd.f32 %v1537, %v1554
      %v1564 = vadd.f32 %v1538, %v1556
      %s1565 = sld [smem:[#allocation6 + $0x4c]]
      %v1566 = vstv %s1565
      %v1567 = vmul.f32 %v1566, %v223
      %v1568 = vmul.f32 %v1566, %v224
      %v1569 = vmul.f32 %v1566, %v225
      %v1570 = vmul.f32 %v1566, %v226
      %1575 = vrot.lane.b32.xlu0 %v1567, 122
      %v1576 = vpop.permute.xlu0 %1575
      %1577 = vrot.lane.b32.xlu0 %v1568, 122
      %v1578 = vpop.permute.xlu0 %1577
      %1579 = vrot.lane.b32.xlu0 %v1569, 122
      %v1580 = vpop.permute.xlu0 %1579
      %1581 = vrot.lane.b32.xlu0 %v1570, 122
      %v1582 = vpop.permute.xlu0 %1581
      %v1587 = vadd.f32 %v1561, %v1576
      %v1588 = vadd.f32 %v1562, %v1578
      %v1589 = vadd.f32 %v1563, %v1580
      %v1590 = vadd.f32 %v1564, %v1582
      %1591 = vst.msk [vmem:[#allocation5 + $0x3] sm:$0xff] %vm53, %v1587
      %1592 = vst.msk [vmem:[#allocation5 + $0xb] sm:$0xff] %vm53, %v1588
      %1593 = vst.msk [vmem:[#allocation5 + $0x1b] sm:$0xff] %vm53, %v1589
      %1594 = vst.msk [vmem:[#allocation5 + $0x23] sm:$0xff] %vm53, %v1590
      %v1595 = vld [vmem:[#allocation5 + $0x3] sm:$0xff]
      %v1596 = vld [vmem:[#allocation5 + $0xb] sm:$0xff]
      %v1597 = vld [vmem:[#allocation5 + $0x1b] sm:$0xff]
      %v1598 = vld [vmem:[#allocation5 + $0x23] sm:$0xff]
      %v1599 = vadd.f32 %v1255, %v1595
      %v1600 = vadd.f32 %v1256, %v1596
      %v1601 = vadd.f32 %v1257, %v1597
      %v1602 = vadd.f32 %v1258, %v1598
      %s1603 = sld [smem:[#allocation6 + $0x1c]]
      %v1604 = vstv %s1603
      %v1605 = vmul.f32 %v1604, %v219
      %v1606 = vmul.f32 %v1604, %v220
      %v1607 = vmul.f32 %v1604, %v221
      %v1608 = vmul.f32 %v1604, %v222
      %v1609 = vadd.f32 %v1605, 0.0
      %v1610 = vadd.f32 %v1606, 0.0
      %v1611 = vadd.f32 %v1607, 0.0
      %v1612 = vadd.f32 %v1608, 0.0
      %s1613 = sld [smem:[#allocation6 + $0x4d]]
      %v1614 = vstv %s1613
      %v1615 = vmul.f32 %v1614, %v223
      %v1616 = vmul.f32 %v1614, %v224
      %v1617 = vmul.f32 %v1614, %v225
      %v1618 = vmul.f32 %v1614, %v226
      %v1619 = vadd.f32 %v1609, %v1615
      %v1620 = vadd.f32 %v1610, %v1616
      %v1621 = vadd.f32 %v1611, %v1617
      %v1622 = vadd.f32 %v1612, %v1618
      %s1623 = sld [smem:[#allocation6 + $0x1d]]
      %v1624 = vstv %s1623
      %v1625 = vmul.f32 %v1624, %v219
      %v1626 = vmul.f32 %v1624, %v220
      %v1627 = vmul.f32 %v1624, %v221
      %v1628 = vmul.f32 %v1624, %v222
      %1633 = vrot.lane.b32.xlu0 %v1625, 127
      %v1634 = vpop.permute.xlu0 %1633
      %1635 = vrot.lane.b32.xlu0 %v1626, 127
      %v1636 = vpop.permute.xlu0 %1635
      %1637 = vrot.lane.b32.xlu0 %v1627, 127
      %v1638 = vpop.permute.xlu0 %1637
      %1639 = vrot.lane.b32.xlu0 %v1628, 127
      %v1640 = vpop.permute.xlu0 %1639
      %v1645 = vadd.f32 %v1619, %v1634
      %v1646 = vadd.f32 %v1620, %v1636
      %v1647 = vadd.f32 %v1621, %v1638
      %v1648 = vadd.f32 %v1622, %v1640
      %s1649 = sld [smem:[#allocation6 + $0x4e]]
      %v1650 = vstv %s1649
      %v1651 = vmul.f32 %v1650, %v223
      %v1652 = vmul.f32 %v1650, %v224
      %v1653 = vmul.f32 %v1650, %v225
      %v1654 = vmul.f32 %v1650, %v226
      %1659 = vrot.lane.b32.xlu0 %v1651, 127
      %v1660 = vpop.permute.xlu0 %1659
      %1661 = vrot.lane.b32.xlu0 %v1652, 127
      %v1662 = vpop.permute.xlu0 %1661
      %1663 = vrot.lane.b32.xlu0 %v1653, 127
      %v1664 = vpop.permute.xlu0 %1663
      %1665 = vrot.lane.b32.xlu0 %v1654, 127
      %v1666 = vpop.permute.xlu0 %1665
      %v1671 = vadd.f32 %v1645, %v1660
      %v1672 = vadd.f32 %v1646, %v1662
      %v1673 = vadd.f32 %v1647, %v1664
      %v1674 = vadd.f32 %v1648, %v1666
      %s1675 = sld [smem:[#allocation6 + $0x1e]]
      %v1676 = vstv %s1675
      %v1677 = vmul.f32 %v1676, %v219
      %v1678 = vmul.f32 %v1676, %v220
      %v1679 = vmul.f32 %v1676, %v221
      %v1680 = vmul.f32 %v1676, %v222
      %1685 = vrot.lane.b32.xlu0 %v1677, 126
      %v1686 = vpop.permute.xlu0 %1685
      %1687 = vrot.lane.b32.xlu0 %v1678, 126
      %v1688 = vpop.permute.xlu0 %1687
      %1689 = vrot.lane.b32.xlu0 %v1679, 126
      %v1690 = vpop.permute.xlu0 %1689
      %1691 = vrot.lane.b32.xlu0 %v1680, 126
      %v1692 = vpop.permute.xlu0 %1691
      %v1697 = vadd.f32 %v1671, %v1686
      %v1698 = vadd.f32 %v1672, %v1688
      %v1699 = vadd.f32 %v1673, %v1690
      %v1700 = vadd.f32 %v1674, %v1692
      %s1701 = sld [smem:[#allocation6 + $0x4f]]
      %v1702 = vstv %s1701
      %v1703 = vmul.f32 %v1702, %v223
      %v1704 = vmul.f32 %v1702, %v224
      %v1705 = vmul.f32 %v1702, %v225
      %v1706 = vmul.f32 %v1702, %v226
      %1711 = vrot.lane.b32.xlu0 %v1703, 126
      %v1712 = vpop.permute.xlu0 %1711
      %1713 = vrot.lane.b32.xlu0 %v1704, 126
      %v1714 = vpop.permute.xlu0 %1713
      %1715 = vrot.lane.b32.xlu0 %v1705, 126
      %v1716 = vpop.permute.xlu0 %1715
      %1717 = vrot.lane.b32.xlu0 %v1706, 126
      %v1718 = vpop.permute.xlu0 %1717
      %v1723 = vadd.f32 %v1697, %v1712
      %v1724 = vadd.f32 %v1698, %v1714
      %v1725 = vadd.f32 %v1699, %v1716
      %v1726 = vadd.f32 %v1700, %v1718
      %s1727 = sld [smem:[#allocation6 + $0x1f]]
      %v1728 = vstv %s1727
      %v1729 = vmul.f32 %v1728, %v219
      %v1730 = vmul.f32 %v1728, %v220
      %v1731 = vmul.f32 %v1728, %v221
      %v1732 = vmul.f32 %v1728, %v222
      %1737 = vrot.lane.b32.xlu0 %v1729, 125
      %v1738 = vpop.permute.xlu0 %1737
      %1739 = vrot.lane.b32.xlu0 %v1730, 125
      %v1740 = vpop.permute.xlu0 %1739
      %1741 = vrot.lane.b32.xlu0 %v1731, 125
      %v1742 = vpop.permute.xlu0 %1741
      %1743 = vrot.lane.b32.xlu0 %v1732, 125
      %v1744 = vpop.permute.xlu0 %1743
      %v1749 = vadd.f32 %v1723, %v1738
      %v1750 = vadd.f32 %v1724, %v1740
      %v1751 = vadd.f32 %v1725, %v1742
      %v1752 = vadd.f32 %v1726, %v1744
      %s1753 = sld [smem:[#allocation6 + $0x50]]
      %v1754 = vstv %s1753
      %v1755 = vmul.f32 %v1754, %v223
      %v1756 = vmul.f32 %v1754, %v224
      %v1757 = vmul.f32 %v1754, %v225
      %v1758 = vmul.f32 %v1754, %v226
      %1763 = vrot.lane.b32.xlu0 %v1755, 125
      %v1764 = vpop.permute.xlu0 %1763
      %1765 = vrot.lane.b32.xlu0 %v1756, 125
      %v1766 = vpop.permute.xlu0 %1765
      %1767 = vrot.lane.b32.xlu0 %v1757, 125
      %v1768 = vpop.permute.xlu0 %1767
      %1769 = vrot.lane.b32.xlu0 %v1758, 125
      %v1770 = vpop.permute.xlu0 %1769
      %v1775 = vadd.f32 %v1749, %v1764
      %v1776 = vadd.f32 %v1750, %v1766
      %v1777 = vadd.f32 %v1751, %v1768
      %v1778 = vadd.f32 %v1752, %v1770
      %s1779 = sld [smem:[#allocation6 + $0x20]]
      %v1780 = vstv %s1779
      %v1781 = vmul.f32 %v1780, %v219
      %v1782 = vmul.f32 %v1780, %v220
      %v1783 = vmul.f32 %v1780, %v221
      %v1784 = vmul.f32 %v1780, %v222
      %1789 = vrot.lane.b32.xlu0 %v1781, 124
      %v1790 = vpop.permute.xlu0 %1789
      %1791 = vrot.lane.b32.xlu0 %v1782, 124
      %v1792 = vpop.permute.xlu0 %1791
      %1793 = vrot.lane.b32.xlu0 %v1783, 124
      %v1794 = vpop.permute.xlu0 %1793
      %1795 = vrot.lane.b32.xlu0 %v1784, 124
      %v1796 = vpop.permute.xlu0 %1795
      %v1801 = vadd.f32 %v1775, %v1790
      %v1802 = vadd.f32 %v1776, %v1792
      %v1803 = vadd.f32 %v1777, %v1794
      %v1804 = vadd.f32 %v1778, %v1796
      %s1805 = sld [smem:[#allocation6 + $0x51]]
      %v1806 = vstv %s1805
      %v1807 = vmul.f32 %v1806, %v223
      %v1808 = vmul.f32 %v1806, %v224
      %v1809 = vmul.f32 %v1806, %v225
      %v1810 = vmul.f32 %v1806, %v226
      %1815 = vrot.lane.b32.xlu0 %v1807, 124
      %v1816 = vpop.permute.xlu0 %1815
      %1817 = vrot.lane.b32.xlu0 %v1808, 124
      %v1818 = vpop.permute.xlu0 %1817
      %1819 = vrot.lane.b32.xlu0 %v1809, 124
      %v1820 = vpop.permute.xlu0 %1819
      %1821 = vrot.lane.b32.xlu0 %v1810, 124
      %v1822 = vpop.permute.xlu0 %1821
      %v1827 = vadd.f32 %v1801, %v1816
      %v1828 = vadd.f32 %v1802, %v1818
      %v1829 = vadd.f32 %v1803, %v1820
      %v1830 = vadd.f32 %v1804, %v1822
      %s1831 = sld [smem:[#allocation6 + $0x21]]
      %v1832 = vstv %s1831
      %v1833 = vmul.f32 %v1832, %v219
      %v1834 = vmul.f32 %v1832, %v220
      %v1835 = vmul.f32 %v1832, %v221
      %v1836 = vmul.f32 %v1832, %v222
      %1841 = vrot.lane.b32.xlu0 %v1833, 123
      %v1842 = vpop.permute.xlu0 %1841
      %1843 = vrot.lane.b32.xlu0 %v1834, 123
      %v1844 = vpop.permute.xlu0 %1843
      %1845 = vrot.lane.b32.xlu0 %v1835, 123
      %v1846 = vpop.permute.xlu0 %1845
      %1847 = vrot.lane.b32.xlu0 %v1836, 123
      %v1848 = vpop.permute.xlu0 %1847
      %v1853 = vadd.f32 %v1827, %v1842
      %v1854 = vadd.f32 %v1828, %v1844
      %v1855 = vadd.f32 %v1829, %v1846
      %v1856 = vadd.f32 %v1830, %v1848
      %s1857 = sld [smem:[#allocation6 + $0x52]]
      %v1858 = vstv %s1857
      %v1859 = vmul.f32 %v1858, %v223
      %v1860 = vmul.f32 %v1858, %v224
      %v1861 = vmul.f32 %v1858, %v225
      %v1862 = vmul.f32 %v1858, %v226
      %1867 = vrot.lane.b32.xlu0 %v1859, 123
      %v1868 = vpop.permute.xlu0 %1867
      %1869 = vrot.lane.b32.xlu0 %v1860, 123
      %v1870 = vpop.permute.xlu0 %1869
      %1871 = vrot.lane.b32.xlu0 %v1861, 123
      %v1872 = vpop.permute.xlu0 %1871
      %1873 = vrot.lane.b32.xlu0 %v1862, 123
      %v1874 = vpop.permute.xlu0 %1873
      %v1879 = vadd.f32 %v1853, %v1868
      %v1880 = vadd.f32 %v1854, %v1870
      %v1881 = vadd.f32 %v1855, %v1872
      %v1882 = vadd.f32 %v1856, %v1874
      %s1883 = sld [smem:[#allocation6 + $0x22]]
      %v1884 = vstv %s1883
      %v1885 = vmul.f32 %v1884, %v219
      %v1886 = vmul.f32 %v1884, %v220
      %v1887 = vmul.f32 %v1884, %v221
      %v1888 = vmul.f32 %v1884, %v222
      %1893 = vrot.lane.b32.xlu0 %v1885, 122
      %v1894 = vpop.permute.xlu0 %1893
      %1895 = vrot.lane.b32.xlu0 %v1886, 122
      %v1896 = vpop.permute.xlu0 %1895
      %1897 = vrot.lane.b32.xlu0 %v1887, 122
      %v1898 = vpop.permute.xlu0 %1897
      %1899 = vrot.lane.b32.xlu0 %v1888, 122
      %v1900 = vpop.permute.xlu0 %1899
      %v1905 = vadd.f32 %v1879, %v1894
      %v1906 = vadd.f32 %v1880, %v1896
      %v1907 = vadd.f32 %v1881, %v1898
      %v1908 = vadd.f32 %v1882, %v1900
      %s1909 = sld [smem:[#allocation6 + $0x53]]
      %v1910 = vstv %s1909
      %v1911 = vmul.f32 %v1910, %v223
      %v1912 = vmul.f32 %v1910, %v224
      %v1913 = vmul.f32 %v1910, %v225
      %v1914 = vmul.f32 %v1910, %v226
      %1919 = vrot.lane.b32.xlu0 %v1911, 122
      %v1920 = vpop.permute.xlu0 %1919
      %1921 = vrot.lane.b32.xlu0 %v1912, 122
      %v1922 = vpop.permute.xlu0 %1921
      %1923 = vrot.lane.b32.xlu0 %v1913, 122
      %v1924 = vpop.permute.xlu0 %1923
      %1925 = vrot.lane.b32.xlu0 %v1914, 122
      %v1926 = vpop.permute.xlu0 %1925
      %v1931 = vadd.f32 %v1905, %v1920
      %v1932 = vadd.f32 %v1906, %v1922
      %v1933 = vadd.f32 %v1907, %v1924
      %v1934 = vadd.f32 %v1908, %v1926
      %1935 = vst.msk [vmem:[#allocation5 + $0x3] sm:$0xff] %vm53, %v1931
      %1936 = vst.msk [vmem:[#allocation5 + $0xb] sm:$0xff] %vm53, %v1932
      %1937 = vst.msk [vmem:[#allocation5 + $0x1b] sm:$0xff] %vm53, %v1933
      %1938 = vst.msk [vmem:[#allocation5 + $0x23] sm:$0xff] %vm53, %v1934
      %v1939 = vld [vmem:[#allocation5 + $0x4] sm:$0xff]
      %v1940 = vld [vmem:[#allocation5 + $0xc] sm:$0xff]
      %v1941 = vld [vmem:[#allocation5 + $0x1c] sm:$0xff]
      %v1942 = vld [vmem:[#allocation5 + $0x24] sm:$0xff]
      %v1943 = vadd.f32 %v1599, %v1939
      %v1944 = vadd.f32 %v1600, %v1940
      %v1945 = vadd.f32 %v1601, %v1941
      %v1946 = vadd.f32 %v1602, %v1942
      %s1947 = sld [smem:[#allocation6 + $0x23]]
      %v1948 = vstv %s1947
      %v1949 = vmul.f32 %v1948, %v219
      %v1950 = vmul.f32 %v1948, %v220
      %v1951 = vmul.f32 %v1948, %v221
      %v1952 = vmul.f32 %v1948, %v222
      %v1953 = vadd.f32 %v1949, 0.0
      %v1954 = vadd.f32 %v1950, 0.0
      %v1955 = vadd.f32 %v1951, 0.0
      %v1956 = vadd.f32 %v1952, 0.0
      %s1957 = sld [smem:[#allocation6 + $0x54]]
      %v1958 = vstv %s1957
      %v1959 = vmul.f32 %v1958, %v223
      %v1960 = vmul.f32 %v1958, %v224
      %v1961 = vmul.f32 %v1958, %v225
      %v1962 = vmul.f32 %v1958, %v226
      %v1963 = vadd.f32 %v1953, %v1959
      %v1964 = vadd.f32 %v1954, %v1960
      %v1965 = vadd.f32 %v1955, %v1961
      %v1966 = vadd.f32 %v1956, %v1962
      %s1967 = sld [smem:[#allocation6 + $0x24]]
      %v1968 = vstv %s1967
      %v1969 = vmul.f32 %v1968, %v219
      %v1970 = vmul.f32 %v1968, %v220
      %v1971 = vmul.f32 %v1968, %v221
      %v1972 = vmul.f32 %v1968, %v222
      %1977 = vrot.lane.b32.xlu0 %v1969, 127
      %v1978 = vpop.permute.xlu0 %1977
      %1979 = vrot.lane.b32.xlu0 %v1970, 127
      %v1980 = vpop.permute.xlu0 %1979
      %1981 = vrot.lane.b32.xlu0 %v1971, 127
      %v1982 = vpop.permute.xlu0 %1981
      %1983 = vrot.lane.b32.xlu0 %v1972, 127
      %v1984 = vpop.permute.xlu0 %1983
      %v1989 = vadd.f32 %v1963, %v1978
      %v1990 = vadd.f32 %v1964, %v1980
      %v1991 = vadd.f32 %v1965, %v1982
      %v1992 = vadd.f32 %v1966, %v1984
      %s1993 = sld [smem:[#allocation6 + $0x55]]
      %v1994 = vstv %s1993
      %v1995 = vmul.f32 %v1994, %v223
      %v1996 = vmul.f32 %v1994, %v224
      %v1997 = vmul.f32 %v1994, %v225
      %v1998 = vmul.f32 %v1994, %v226
      %2003 = vrot.lane.b32.xlu0 %v1995, 127
      %v2004 = vpop.permute.xlu0 %2003
      %2005 = vrot.lane.b32.xlu0 %v1996, 127
      %v2006 = vpop.permute.xlu0 %2005
      %2007 = vrot.lane.b32.xlu0 %v1997, 127
      %v2008 = vpop.permute.xlu0 %2007
      %2009 = vrot.lane.b32.xlu0 %v1998, 127
      %v2010 = vpop.permute.xlu0 %2009
      %v2015 = vadd.f32 %v1989, %v2004
      %v2016 = vadd.f32 %v1990, %v2006
      %v2017 = vadd.f32 %v1991, %v2008
      %v2018 = vadd.f32 %v1992, %v2010
      %s2019 = sld [smem:[#allocation6 + $0x25]]
      %v2020 = vstv %s2019
      %v2021 = vmul.f32 %v2020, %v219
      %v2022 = vmul.f32 %v2020, %v220
      %v2023 = vmul.f32 %v2020, %v221
      %v2024 = vmul.f32 %v2020, %v222
      %2029 = vrot.lane.b32.xlu0 %v2021, 126
      %v2030 = vpop.permute.xlu0 %2029
      %2031 = vrot.lane.b32.xlu0 %v2022, 126
      %v2032 = vpop.permute.xlu0 %2031
      %2033 = vrot.lane.b32.xlu0 %v2023, 126
      %v2034 = vpop.permute.xlu0 %2033
      %2035 = vrot.lane.b32.xlu0 %v2024, 126
      %v2036 = vpop.permute.xlu0 %2035
      %v2041 = vadd.f32 %v2015, %v2030
      %v2042 = vadd.f32 %v2016, %v2032
      %v2043 = vadd.f32 %v2017, %v2034
      %v2044 = vadd.f32 %v2018, %v2036
      %s2045 = sld [smem:[#allocation6 + $0x56]]
      %v2046 = vstv %s2045
      %v2047 = vmul.f32 %v2046, %v223
      %v2048 = vmul.f32 %v2046, %v224
      %v2049 = vmul.f32 %v2046, %v225
      %v2050 = vmul.f32 %v2046, %v226
      %2055 = vrot.lane.b32.xlu0 %v2047, 126
      %v2056 = vpop.permute.xlu0 %2055
      %2057 = vrot.lane.b32.xlu0 %v2048, 126
      %v2058 = vpop.permute.xlu0 %2057
      %2059 = vrot.lane.b32.xlu0 %v2049, 126
      %v2060 = vpop.permute.xlu0 %2059
      %2061 = vrot.lane.b32.xlu0 %v2050, 126
      %v2062 = vpop.permute.xlu0 %2061
      %v2067 = vadd.f32 %v2041, %v2056
      %v2068 = vadd.f32 %v2042, %v2058
      %v2069 = vadd.f32 %v2043, %v2060
      %v2070 = vadd.f32 %v2044, %v2062
      %s2071 = sld [smem:[#allocation6 + $0x26]]
      %v2072 = vstv %s2071
      %v2073 = vmul.f32 %v2072, %v219
      %v2074 = vmul.f32 %v2072, %v220
      %v2075 = vmul.f32 %v2072, %v221
      %v2076 = vmul.f32 %v2072, %v222
      %2081 = vrot.lane.b32.xlu0 %v2073, 125
      %v2082 = vpop.permute.xlu0 %2081
      %2083 = vrot.lane.b32.xlu0 %v2074, 125
      %v2084 = vpop.permute.xlu0 %2083
      %2085 = vrot.lane.b32.xlu0 %v2075, 125
      %v2086 = vpop.permute.xlu0 %2085
      %2087 = vrot.lane.b32.xlu0 %v2076, 125
      %v2088 = vpop.permute.xlu0 %2087
      %v2093 = vadd.f32 %v2067, %v2082
      %v2094 = vadd.f32 %v2068, %v2084
      %v2095 = vadd.f32 %v2069, %v2086
      %v2096 = vadd.f32 %v2070, %v2088
      %s2097 = sld [smem:[#allocation6 + $0x57]]
      %v2098 = vstv %s2097
      %v2099 = vmul.f32 %v2098, %v223
      %v2100 = vmul.f32 %v2098, %v224
      %v2101 = vmul.f32 %v2098, %v225
      %v2102 = vmul.f32 %v2098, %v226
      %2107 = vrot.lane.b32.xlu0 %v2099, 125
      %v2108 = vpop.permute.xlu0 %2107
      %2109 = vrot.lane.b32.xlu0 %v2100, 125
      %v2110 = vpop.permute.xlu0 %2109
      %2111 = vrot.lane.b32.xlu0 %v2101, 125
      %v2112 = vpop.permute.xlu0 %2111
      %2113 = vrot.lane.b32.xlu0 %v2102, 125
      %v2114 = vpop.permute.xlu0 %2113
      %v2119 = vadd.f32 %v2093, %v2108
      %v2120 = vadd.f32 %v2094, %v2110
      %v2121 = vadd.f32 %v2095, %v2112
      %v2122 = vadd.f32 %v2096, %v2114
      %s2123 = sld [smem:[#allocation6 + $0x27]]
      %v2124 = vstv %s2123
      %v2125 = vmul.f32 %v2124, %v219
      %v2126 = vmul.f32 %v2124, %v220
      %v2127 = vmul.f32 %v2124, %v221
      %v2128 = vmul.f32 %v2124, %v222
      %2133 = vrot.lane.b32.xlu0 %v2125, 124
      %v2134 = vpop.permute.xlu0 %2133
      %2135 = vrot.lane.b32.xlu0 %v2126, 124
      %v2136 = vpop.permute.xlu0 %2135
      %2137 = vrot.lane.b32.xlu0 %v2127, 124
      %v2138 = vpop.permute.xlu0 %2137
      %2139 = vrot.lane.b32.xlu0 %v2128, 124
      %v2140 = vpop.permute.xlu0 %2139
      %v2145 = vadd.f32 %v2119, %v2134
      %v2146 = vadd.f32 %v2120, %v2136
      %v2147 = vadd.f32 %v2121, %v2138
      %v2148 = vadd.f32 %v2122, %v2140
      %s2149 = sld [smem:[#allocation6 + $0x58]]
      %v2150 = vstv %s2149
      %v2151 = vmul.f32 %v2150, %v223
      %v2152 = vmul.f32 %v2150, %v224
      %v2153 = vmul.f32 %v2150, %v225
      %v2154 = vmul.f32 %v2150, %v226
      %2159 = vrot.lane.b32.xlu0 %v2151, 124
      %v2160 = vpop.permute.xlu0 %2159
      %2161 = vrot.lane.b32.xlu0 %v2152, 124
      %v2162 = vpop.permute.xlu0 %2161
      %2163 = vrot.lane.b32.xlu0 %v2153, 124
      %v2164 = vpop.permute.xlu0 %2163
      %2165 = vrot.lane.b32.xlu0 %v2154, 124
      %v2166 = vpop.permute.xlu0 %2165
      %v2171 = vadd.f32 %v2145, %v2160
      %v2172 = vadd.f32 %v2146, %v2162
      %v2173 = vadd.f32 %v2147, %v2164
      %v2174 = vadd.f32 %v2148, %v2166
      %s2175 = sld [smem:[#allocation6 + $0x28]]
      %v2176 = vstv %s2175
      %v2177 = vmul.f32 %v2176, %v219
      %v2178 = vmul.f32 %v2176, %v220
      %v2179 = vmul.f32 %v2176, %v221
      %v2180 = vmul.f32 %v2176, %v222
      %2185 = vrot.lane.b32.xlu0 %v2177, 123
      %v2186 = vpop.permute.xlu0 %2185
      %2187 = vrot.lane.b32.xlu0 %v2178, 123
      %v2188 = vpop.permute.xlu0 %2187
      %2189 = vrot.lane.b32.xlu0 %v2179, 123
      %v2190 = vpop.permute.xlu0 %2189
      %2191 = vrot.lane.b32.xlu0 %v2180, 123
      %v2192 = vpop.permute.xlu0 %2191
      %v2197 = vadd.f32 %v2171, %v2186
      %v2198 = vadd.f32 %v2172, %v2188
      %v2199 = vadd.f32 %v2173, %v2190
      %v2200 = vadd.f32 %v2174, %v2192
      %s2201 = sld [smem:[#allocation6 + $0x59]]
      %v2202 = vstv %s2201
      %v2203 = vmul.f32 %v2202, %v223
      %v2204 = vmul.f32 %v2202, %v224
      %v2205 = vmul.f32 %v2202, %v225
      %v2206 = vmul.f32 %v2202, %v226
      %2211 = vrot.lane.b32.xlu0 %v2203, 123
      %v2212 = vpop.permute.xlu0 %2211
      %2213 = vrot.lane.b32.xlu0 %v2204, 123
      %v2214 = vpop.permute.xlu0 %2213
      %2215 = vrot.lane.b32.xlu0 %v2205, 123
      %v2216 = vpop.permute.xlu0 %2215
      %2217 = vrot.lane.b32.xlu0 %v2206, 123
      %v2218 = vpop.permute.xlu0 %2217
      %v2223 = vadd.f32 %v2197, %v2212
      %v2224 = vadd.f32 %v2198, %v2214
      %v2225 = vadd.f32 %v2199, %v2216
      %v2226 = vadd.f32 %v2200, %v2218
      %s2227 = sld [smem:[#allocation6 + $0x29]]
      %v2228 = vstv %s2227
      %v2229 = vmul.f32 %v2228, %v219
      %v2230 = vmul.f32 %v2228, %v220
      %v2231 = vmul.f32 %v2228, %v221
      %v2232 = vmul.f32 %v2228, %v222
      %2237 = vrot.lane.b32.xlu0 %v2229, 122
      %v2238 = vpop.permute.xlu0 %2237
      %2239 = vrot.lane.b32.xlu0 %v2230, 122
      %v2240 = vpop.permute.xlu0 %2239
      %2241 = vrot.lane.b32.xlu0 %v2231, 122
      %v2242 = vpop.permute.xlu0 %2241
      %2243 = vrot.lane.b32.xlu0 %v2232, 122
      %v2244 = vpop.permute.xlu0 %2243
      %v2249 = vadd.f32 %v2223, %v2238
      %v2250 = vadd.f32 %v2224, %v2240
      %v2251 = vadd.f32 %v2225, %v2242
      %v2252 = vadd.f32 %v2226, %v2244
      %s2253 = sld [smem:[#allocation6 + $0x5a]]
      %v2254 = vstv %s2253
      %v2255 = vmul.f32 %v2254, %v223
      %v2256 = vmul.f32 %v2254, %v224
      %v2257 = vmul.f32 %v2254, %v225
      %v2258 = vmul.f32 %v2254, %v226
      %2263 = vrot.lane.b32.xlu0 %v2255, 122
      %v2264 = vpop.permute.xlu0 %2263
      %2265 = vrot.lane.b32.xlu0 %v2256, 122
      %v2266 = vpop.permute.xlu0 %2265
      %2267 = vrot.lane.b32.xlu0 %v2257, 122
      %v2268 = vpop.permute.xlu0 %2267
      %2269 = vrot.lane.b32.xlu0 %v2258, 122
      %v2270 = vpop.permute.xlu0 %2269
      %v2275 = vadd.f32 %v2249, %v2264
      %v2276 = vadd.f32 %v2250, %v2266
      %v2277 = vadd.f32 %v2251, %v2268
      %v2278 = vadd.f32 %v2252, %v2270
      %2279 = vst.msk [vmem:[#allocation5 + $0x3] sm:$0xff] %vm53, %v2275
      %2280 = vst.msk [vmem:[#allocation5 + $0xb] sm:$0xff] %vm53, %v2276
      %2281 = vst.msk [vmem:[#allocation5 + $0x1b] sm:$0xff] %vm53, %v2277
      %2282 = vst.msk [vmem:[#allocation5 + $0x23] sm:$0xff] %vm53, %v2278
      %v2283 = vld [vmem:[#allocation5 + $0x5] sm:$0xff]
      %v2284 = vld [vmem:[#allocation5 + $0xd] sm:$0xff]
      %v2285 = vld [vmem:[#allocation5 + $0x1d] sm:$0xff]
      %v2286 = vld [vmem:[#allocation5 + $0x25] sm:$0xff]
      %v2287 = vadd.f32 %v1943, %v2283
      %v2288 = vadd.f32 %v1944, %v2284
      %v2289 = vadd.f32 %v1945, %v2285
      %v2290 = vadd.f32 %v1946, %v2286
      %s2291 = sld [smem:[#allocation6 + $0x2a]]
      %v2292 = vstv %s2291
      %v2293 = vmul.f32 %v2292, %v219
      %v2294 = vmul.f32 %v2292, %v220
      %v2295 = vmul.f32 %v2292, %v221
      %v2296 = vmul.f32 %v2292, %v222
      %v2297 = vadd.f32 %v2293, 0.0
      %v2298 = vadd.f32 %v2294, 0.0
      %v2299 = vadd.f32 %v2295, 0.0
      %v2300 = vadd.f32 %v2296, 0.0
      %s2301 = sld [smem:[#allocation6 + $0x5b]]
      %v2302 = vstv %s2301
      %v2303 = vmul.f32 %v2302, %v223
      %v2304 = vmul.f32 %v2302, %v224
      %v2305 = vmul.f32 %v2302, %v225
      %v2306 = vmul.f32 %v2302, %v226
      %v2307 = vadd.f32 %v2297, %v2303
      %v2308 = vadd.f32 %v2298, %v2304
      %v2309 = vadd.f32 %v2299, %v2305
      %v2310 = vadd.f32 %v2300, %v2306
      %s2311 = sld [smem:[#allocation6 + $0x2b]]
      %v2312 = vstv %s2311
      %v2313 = vmul.f32 %v2312, %v219
      %v2314 = vmul.f32 %v2312, %v220
      %v2315 = vmul.f32 %v2312, %v221
      %v2316 = vmul.f32 %v2312, %v222
      %2321 = vrot.lane.b32.xlu0 %v2313, 127
      %v2322 = vpop.permute.xlu0 %2321
      %2323 = vrot.lane.b32.xlu0 %v2314, 127
      %v2324 = vpop.permute.xlu0 %2323
      %2325 = vrot.lane.b32.xlu0 %v2315, 127
      %v2326 = vpop.permute.xlu0 %2325
      %2327 = vrot.lane.b32.xlu0 %v2316, 127
      %v2328 = vpop.permute.xlu0 %2327
      %v2333 = vadd.f32 %v2307, %v2322
      %v2334 = vadd.f32 %v2308, %v2324
      %v2335 = vadd.f32 %v2309, %v2326
      %v2336 = vadd.f32 %v2310, %v2328
      %s2337 = sld [smem:[#allocation6 + $0x5c]]
      %v2338 = vstv %s2337
      %v2339 = vmul.f32 %v2338, %v223
      %v2340 = vmul.f32 %v2338, %v224
      %v2341 = vmul.f32 %v2338, %v225
      %v2342 = vmul.f32 %v2338, %v226
      %2347 = vrot.lane.b32.xlu0 %v2339, 127
      %v2348 = vpop.permute.xlu0 %2347
      %2349 = vrot.lane.b32.xlu0 %v2340, 127
      %v2350 = vpop.permute.xlu0 %2349
      %2351 = vrot.lane.b32.xlu0 %v2341, 127
      %v2352 = vpop.permute.xlu0 %2351
      %2353 = vrot.lane.b32.xlu0 %v2342, 127
      %v2354 = vpop.permute.xlu0 %2353
      %v2359 = vadd.f32 %v2333, %v2348
      %v2360 = vadd.f32 %v2334, %v2350
      %v2361 = vadd.f32 %v2335, %v2352
      %v2362 = vadd.f32 %v2336, %v2354
      %s2363 = sld [smem:[#allocation6 + $0x2c]]
      %v2364 = vstv %s2363
      %v2365 = vmul.f32 %v2364, %v219
      %v2366 = vmul.f32 %v2364, %v220
      %v2367 = vmul.f32 %v2364, %v221
      %v2368 = vmul.f32 %v2364, %v222
      %2373 = vrot.lane.b32.xlu0 %v2365, 126
      %v2374 = vpop.permute.xlu0 %2373
      %2375 = vrot.lane.b32.xlu0 %v2366, 126
      %v2376 = vpop.permute.xlu0 %2375
      %2377 = vrot.lane.b32.xlu0 %v2367, 126
      %v2378 = vpop.permute.xlu0 %2377
      %2379 = vrot.lane.b32.xlu0 %v2368, 126
      %v2380 = vpop.permute.xlu0 %2379
      %v2385 = vadd.f32 %v2359, %v2374
      %v2386 = vadd.f32 %v2360, %v2376
      %v2387 = vadd.f32 %v2361, %v2378
      %v2388 = vadd.f32 %v2362, %v2380
      %s2389 = sld [smem:[#allocation6 + $0x5d]]
      %v2390 = vstv %s2389
      %v2391 = vmul.f32 %v2390, %v223
      %v2392 = vmul.f32 %v2390, %v224
      %v2393 = vmul.f32 %v2390, %v225
      %v2394 = vmul.f32 %v2390, %v226
      %2399 = vrot.lane.b32.xlu0 %v2391, 126
      %v2400 = vpop.permute.xlu0 %2399
      %2401 = vrot.lane.b32.xlu0 %v2392, 126
      %v2402 = vpop.permute.xlu0 %2401
      %2403 = vrot.lane.b32.xlu0 %v2393, 126
      %v2404 = vpop.permute.xlu0 %2403
      %2405 = vrot.lane.b32.xlu0 %v2394, 126
      %v2406 = vpop.permute.xlu0 %2405
      %v2411 = vadd.f32 %v2385, %v2400
      %v2412 = vadd.f32 %v2386, %v2402
      %v2413 = vadd.f32 %v2387, %v2404
      %v2414 = vadd.f32 %v2388, %v2406
      %s2415 = sld [smem:[#allocation6 + $0x2d]]
      %v2416 = vstv %s2415
      %v2417 = vmul.f32 %v2416, %v219
      %v2418 = vmul.f32 %v2416, %v220
      %v2419 = vmul.f32 %v2416, %v221
      %v2420 = vmul.f32 %v2416, %v222
      %2425 = vrot.lane.b32.xlu0 %v2417, 125
      %v2426 = vpop.permute.xlu0 %2425
      %2427 = vrot.lane.b32.xlu0 %v2418, 125
      %v2428 = vpop.permute.xlu0 %2427
      %2429 = vrot.lane.b32.xlu0 %v2419, 125
      %v2430 = vpop.permute.xlu0 %2429
      %2431 = vrot.lane.b32.xlu0 %v2420, 125
      %v2432 = vpop.permute.xlu0 %2431
      %v2437 = vadd.f32 %v2411, %v2426
      %v2438 = vadd.f32 %v2412, %v2428
      %v2439 = vadd.f32 %v2413, %v2430
      %v2440 = vadd.f32 %v2414, %v2432
      %s2441 = sld [smem:[#allocation6 + $0x5e]]
      %v2442 = vstv %s2441
      %v2443 = vmul.f32 %v2442, %v223
      %v2444 = vmul.f32 %v2442, %v224
      %v2445 = vmul.f32 %v2442, %v225
      %v2446 = vmul.f32 %v2442, %v226
      %2451 = vrot.lane.b32.xlu0 %v2443, 125
      %v2452 = vpop.permute.xlu0 %2451
      %2453 = vrot.lane.b32.xlu0 %v2444, 125
      %v2454 = vpop.permute.xlu0 %2453
      %2455 = vrot.lane.b32.xlu0 %v2445, 125
      %v2456 = vpop.permute.xlu0 %2455
      %2457 = vrot.lane.b32.xlu0 %v2446, 125
      %v2458 = vpop.permute.xlu0 %2457
      %v2463 = vadd.f32 %v2437, %v2452
      %v2464 = vadd.f32 %v2438, %v2454
      %v2465 = vadd.f32 %v2439, %v2456
      %v2466 = vadd.f32 %v2440, %v2458
      %s2467 = sld [smem:[#allocation6 + $0x2e]]
      %v2468 = vstv %s2467
      %v2469 = vmul.f32 %v2468, %v219
      %v2470 = vmul.f32 %v2468, %v220
      %v2471 = vmul.f32 %v2468, %v221
      %v2472 = vmul.f32 %v2468, %v222
      %2477 = vrot.lane.b32.xlu0 %v2469, 124
      %v2478 = vpop.permute.xlu0 %2477
      %2479 = vrot.lane.b32.xlu0 %v2470, 124
      %v2480 = vpop.permute.xlu0 %2479
      %2481 = vrot.lane.b32.xlu0 %v2471, 124
      %v2482 = vpop.permute.xlu0 %2481
      %2483 = vrot.lane.b32.xlu0 %v2472, 124
      %v2484 = vpop.permute.xlu0 %2483
      %v2489 = vadd.f32 %v2463, %v2478
      %v2490 = vadd.f32 %v2464, %v2480
      %v2491 = vadd.f32 %v2465, %v2482
      %v2492 = vadd.f32 %v2466, %v2484
      %s2493 = sld [smem:[#allocation6 + $0x5f]]
      %v2494 = vstv %s2493
      %v2495 = vmul.f32 %v2494, %v223
      %v2496 = vmul.f32 %v2494, %v224
      %v2497 = vmul.f32 %v2494, %v225
      %v2498 = vmul.f32 %v2494, %v226
      %2503 = vrot.lane.b32.xlu0 %v2495, 124
      %v2504 = vpop.permute.xlu0 %2503
      %2505 = vrot.lane.b32.xlu0 %v2496, 124
      %v2506 = vpop.permute.xlu0 %2505
      %2507 = vrot.lane.b32.xlu0 %v2497, 124
      %v2508 = vpop.permute.xlu0 %2507
      %2509 = vrot.lane.b32.xlu0 %v2498, 124
      %v2510 = vpop.permute.xlu0 %2509
      %v2515 = vadd.f32 %v2489, %v2504
      %v2516 = vadd.f32 %v2490, %v2506
      %v2517 = vadd.f32 %v2491, %v2508
      %v2518 = vadd.f32 %v2492, %v2510
      %s2519 = sld [smem:[#allocation6 + $0x2f]]
      %v2520 = vstv %s2519
      %v2521 = vmul.f32 %v2520, %v219
      %v2522 = vmul.f32 %v2520, %v220
      %v2523 = vmul.f32 %v2520, %v221
      %v2524 = vmul.f32 %v2520, %v222
      %2529 = vrot.lane.b32.xlu0 %v2521, 123
      %v2530 = vpop.permute.xlu0 %2529
      %2531 = vrot.lane.b32.xlu0 %v2522, 123
      %v2532 = vpop.permute.xlu0 %2531
      %2533 = vrot.lane.b32.xlu0 %v2523, 123
      %v2534 = vpop.permute.xlu0 %2533
      %2535 = vrot.lane.b32.xlu0 %v2524, 123
      %v2536 = vpop.permute.xlu0 %2535
      %v2541 = vadd.f32 %v2515, %v2530
      %v2542 = vadd.f32 %v2516, %v2532
      %v2543 = vadd.f32 %v2517, %v2534
      %v2544 = vadd.f32 %v2518, %v2536
      %s2545 = sld [smem:[#allocation6 + $0x60]]
      %v2546 = vstv %s2545
      %v2547 = vmul.f32 %v2546, %v223
      %v2548 = vmul.f32 %v2546, %v224
      %v2549 = vmul.f32 %v2546, %v225
      %v2550 = vmul.f32 %v2546, %v226
      %2555 = vrot.lane.b32.xlu0 %v2547, 123
      %v2556 = vpop.permute.xlu0 %2555
      %2557 = vrot.lane.b32.xlu0 %v2548, 123
      %v2558 = vpop.permute.xlu0 %2557
      %2559 = vrot.lane.b32.xlu0 %v2549, 123
      %v2560 = vpop.permute.xlu0 %2559
      %2561 = vrot.lane.b32.xlu0 %v2550, 123
      %v2562 = vpop.permute.xlu0 %2561
      %v2567 = vadd.f32 %v2541, %v2556
      %v2568 = vadd.f32 %v2542, %v2558
      %v2569 = vadd.f32 %v2543, %v2560
      %v2570 = vadd.f32 %v2544, %v2562
      %s2571 = sld [smem:[#allocation6 + $0x30]]
      %v2572 = vstv %s2571
      %v2573 = vmul.f32 %v2572, %v219
      %v2574 = vmul.f32 %v2572, %v220
      %v2575 = vmul.f32 %v2572, %v221
      %v2576 = vmul.f32 %v2572, %v222
      %2581 = vrot.lane.b32.xlu0 %v2573, 122
      %v2582 = vpop.permute.xlu0 %2581
      %2583 = vrot.lane.b32.xlu0 %v2574, 122
      %v2584 = vpop.permute.xlu0 %2583
      %2585 = vrot.lane.b32.xlu0 %v2575, 122
      %v2586 = vpop.permute.xlu0 %2585
      %2587 = vrot.lane.b32.xlu0 %v2576, 122
      %v2588 = vpop.permute.xlu0 %2587
      %v2593 = vadd.f32 %v2567, %v2582
      %v2594 = vadd.f32 %v2568, %v2584
      %v2595 = vadd.f32 %v2569, %v2586
      %v2596 = vadd.f32 %v2570, %v2588
      %s2597 = sld [smem:[#allocation6 + $0x61]]
      %v2598 = vstv %s2597
      %v2599 = vmul.f32 %v2598, %v223
      %v2600 = vmul.f32 %v2598, %v224
      %v2601 = vmul.f32 %v2598, %v225
      %v2602 = vmul.f32 %v2598, %v226
      %2607 = vrot.lane.b32.xlu0 %v2599, 122
      %v2608 = vpop.permute.xlu0 %2607
      %2609 = vrot.lane.b32.xlu0 %v2600, 122
      %v2610 = vpop.permute.xlu0 %2609
      %2611 = vrot.lane.b32.xlu0 %v2601, 122
      %v2612 = vpop.permute.xlu0 %2611
      %2613 = vrot.lane.b32.xlu0 %v2602, 122
      %v2614 = vpop.permute.xlu0 %2613
      %v2619 = vadd.f32 %v2593, %v2608
      %v2620 = vadd.f32 %v2594, %v2610
      %v2621 = vadd.f32 %v2595, %v2612
      %v2622 = vadd.f32 %v2596, %v2614
      %2623 = vst.msk [vmem:[#allocation5 + $0x3] sm:$0xff] %vm53, %v2619
      %2624 = vst.msk [vmem:[#allocation5 + $0xb] sm:$0xff] %vm53, %v2620
      %2625 = vst.msk [vmem:[#allocation5 + $0x1b] sm:$0xff] %vm53, %v2621
      %2626 = vst.msk [vmem:[#allocation5 + $0x23] sm:$0xff] %vm53, %v2622
      %v2627 = vld [vmem:[#allocation5 + $0x6] sm:$0xff]
      %v2628 = vld [vmem:[#allocation5 + $0xe] sm:$0xff]
      %v2629 = vld [vmem:[#allocation5 + $0x1e] sm:$0xff]
      %v2630 = vld [vmem:[#allocation5 + $0x26] sm:$0xff]
      %v2631 = vadd.f32 %v2287, %v2627
      %v2632 = vadd.f32 %v2288, %v2628
      %v2633 = vadd.f32 %v2289, %v2629
      %v2634 = vadd.f32 %v2290, %v2630
      %v2635 = vxor.u32 %v2631, 2147483648
      %v2636 = vxor.u32 %v2632, 2147483648
      %v2637 = vxor.u32 %v2633, 2147483648
      %v2638 = vxor.u32 %v2634, 2147483648
      %v2639 = vmul.f32 %v2635, 1.442695
      %v2640 = vpow.pop %v2639
      %v2641 = vmul.f32 %v2636, 1.442695
      %v2642 = vpow.pop %v2641
      %v2643 = vmul.f32 %v2637, 1.442695
      %v2644 = vpow.pop %v2643
      %v2645 = vmul.f32 %v2638, 1.442695
      %v2646 = vpow.pop %v2645
      %v2647 = vadd.f32 %v2640, 1.0
      %v2648 = vadd.f32 %v2642, 1.0
      %v2649 = vadd.f32 %v2644, 1.0
      %v2650 = vadd.f32 %v2646, 1.0
      %v2651 = vrcp.pop %v2647
      %v2652 = vmul.f32 1.0, %v2651
      %v2653 = vrcp.pop %v2648
      %v2654 = vmul.f32 1.0, %v2653
      %v2655 = vrcp.pop %v2649
      %v2656 = vmul.f32 1.0, %v2655
      %v2657 = vrcp.pop %v2650
      %v2658 = vmul.f32 1.0, %v2657
      %2659 = vst.msk [vmem:[#allocation11] sm:$0xff] %vm53, %v2652
      %2660 = vst.msk [vmem:[#allocation11 + $0x8] sm:$0xff] %vm53, %v2654
      %2661 = vst.msk [vmem:[#allocation11 + $0x10] sm:$0xff] %vm53, %v2656
      %2662 = vst.msk [vmem:[#allocation11 + $0x18] sm:$0xff] %vm53, %v2658
    $region29: #{tpu_custom_call.1} parent=1 // pred_fallthru
      _
    // Predicated region
    $region30: #{tpu_custom_call.1} parent=1 // pred_check
      _
    $region31: #{tpu_custom_call.1} parent=1 // pred_check_branch
      %2664 = sbr.rel (0) target = $region33
    $region32: #{tpu_custom_call.1} parent=1 // pred_region
      %s2666 = ssub.s32 512, 512
      %2667 = vsyncadd [#allocation8], %s2666
      %s2668 = sshll.u32 [#allocation11], 4
      %s2669 = int_to_ptr.vmem [resolvable:$true] %s2668
      %2674 = dma.vmem_to_hbm [thread:$0]  %s2669, 512, %s2, [#allocation8], 128, 128, 8
    $region33: #{tpu_custom_call.1} parent=1 // pred_fallthru
      _
    // Predicated region
    $region34: #{tpu_custom_call.1} parent=1 // pred_check
      _
    $region35: #{tpu_custom_call.1} parent=1 // pred_check_branch
      %2676 = sbr.rel (0) target = $region37
    $region36: #{tpu_custom_call.1} parent=1 // pred_region
      %2677 = dma.done [#allocation8], 512
    $region37: #{tpu_custom_call.1} parent=1 // pred_fallthru
      _
    %2678 = vsyncpa [#allocation7], 1
    %2679 = vsyncpa [#allocation8], 1
    %2680 = vsyncpa [#allocation9], 1

</llo_original>
